<compile_context>
chip_gen: v6e
topology: v6e:2x2x1
jax: 0.10.0
libtpu: 0.0.40
codegen_flags: <defaults>
</compile_context>

<pallas_src>
import functools

import jax
import jax.numpy as jnp
from jax.experimental import pallas as pl
from jax.experimental.pallas import tpu as pltpu


def _ffn_kernel(x_ref, w1_ref, b1_ref, w2_ref, b2_ref, o_ref, acc_ref):
    f = pl.program_id(1)

    @pl.when(f == 0)
    def _():
        acc_ref[...] = jnp.zeros_like(acc_ref)

    # Linear 1 slab: (tm, d_model) @ (d_model, tf) + b1 slab, then ReLU.
    h = jnp.dot(x_ref[...], w1_ref[...], preferred_element_type=jnp.float32)
    b1_slab = b1_ref[pl.ds(f, 1), :]                # (1, tf) row f of resident b1
    h = jnp.maximum(h + b1_slab.astype(jnp.float32), 0.0)
    # Dropout: eval/inference semantics -> identity.
    # TODO(synk): training-mode dropout (pltpu.prng_seed + pltpu.prng_random_bits mask,
    #             1/(1-p) scale, seeded per (i, f) tile).
    # TODO(synk): v5e micro-opt - chunk the (tm, tf) hidden slab with an inner
    #             lax.fori_loop(unroll=True) to lower vreg/VMEM pressure on h.

    # Linear 2 slab: accumulate (tm, tf) @ (tf, d_model) into the f32 scratch.
    acc_ref[...] += jnp.dot(h.astype(w2_ref.dtype), w2_ref[...],
                            preferred_element_type=jnp.float32)

    @pl.when(f == pl.num_programs(1) - 1)
    def _():
        o_ref[...] = (acc_ref[...] + b2_ref[...]).astype(o_ref.dtype)


def _pick_tile(n, target, aligns):
    """Largest divisor of n that is <= target, preferring the coarsest alignment.

    Falls back to the full extent n (always a legal Pallas block)."""
    if n <= target:
        return n
    for align in aligns:
        t = (target // align) * align
        while t >= align:
            if n % t == 0:
                return t
            t -= align
    return n


def _vmem_bytes(tm, tf, d_model, d_ff, x_isz, w_isz, o_isz):
    """Rough VMEM footprint of one grid step (double-buffered streams + scratch)."""
    vmem = 2 * tm * d_model * x_isz                    # x tile
    vmem += 2 * (d_model * tf + tf * d_model) * w_isz  # w1 / w2 slabs (streamed)
    vmem += 2 * (d_ff + d_model) * w_isz               # resident b1 + b2
    vmem += 2 * tm * d_model * o_isz                   # output tile
    vmem += tm * d_model * 4                           # f32 accumulator scratch
    vmem += tm * tf * 4                                # f32 hidden slab intermediate
    return vmem


def _vmem_capacity_bytes():
    try:
        return int(pltpu.get_tpu_info().vmem_capacity_bytes)
    except Exception:
        return 64 << 20  # conservative fallback: smallest per-core VMEM (v7x)


@functools.partial(jax.jit, static_argnames=("tm_target", "tf_target"))
def feed_forward(x, w1, b1, w2, b2, *, tm_target=1024, tf_target=512):
    """x: (B, S, d_model). w1: (d_model, d_ff), b1: (d_ff,), w2: (d_ff, d_model), b2: (d_model,)."""
    B, S, d_model = x.shape
    d_ff = w1.shape[1]
    M = B * S

    x2 = x.reshape(M, d_model)

    x_isz = jnp.dtype(x.dtype).itemsize
    w_isz = jnp.dtype(w1.dtype).itemsize
    sublane = max(8, 32 // x_isz)  # dtype-aware packing: 8 (f32) / 16 (bf16) / 32 (int8)

    # Generation-aware VMEM budget: ~85% of physical per-core VMEM
    # (v5e/v6e 128 MiB -> ~108 MiB, v7x 64 MiB -> ~54 MiB) leaving compiler headroom.
    vmem_budget = max(int(_vmem_capacity_bytes() * 0.85), 32 << 20)

    # Keep grid[0] >= 2 when M allows MXU-aligned halves, so the "parallel" M axis
    # can be sharded across v7x's two TensorCores.
    tm_cap = min(tm_target, M // 2) if M >= 2 * 128 else tm_target
    tm = _pick_tile(M, max(tm_cap, sublane), (256, 128, sublane))
    tf = _pick_tile(d_ff, tf_target, (256, 128, 8))

    # Shrink tiles to fit the VMEM budget; prefer shrinking tf (slab width) and
    # keep tm (weight reuse) as large as possible.
    while _vmem_bytes(tm, tf, d_model, d_ff, x_isz, w_isz, x_isz) > vmem_budget:
        if tf > 256:
            new_tf = _pick_tile(d_ff, max(tf // 2, 128), (256, 128, 8))
            if new_tf < tf:
                tf = new_tf
                continue
        new_tm = _pick_tile(M, max(tm // 2, sublane), (256, 128, sublane))
        if new_tm < tm:
            tm = new_tm
            continue
        break  # cannot shrink further; rely on vmem_limit_bytes

    grid = (M // tm, d_ff // tf)
    nf = d_ff // tf

    b1_2d = b1.reshape(nf, tf)         # row f == b1[f*tf:(f+1)*tf]; kept fully resident
    b2_2d = b2.reshape(1, d_model)

    flops = 4 * M * d_model * d_ff
    # Weights are re-streamed once per M tile (their index_maps ignore i).
    bytes_accessed = int((x2.size + M * d_model) * x_isz
                         + grid[0] * (w1.size + w2.size) * w_isz
                         + (b1.size + b2.size) * w_isz)

    out = pl.pallas_call(
        _ffn_kernel,
        out_shape=jax.ShapeDtypeStruct((M, d_model), x.dtype),
        grid_spec=pltpu.PrefetchScalarGridSpec(
            num_scalar_prefetch=0,
            grid=grid,
            in_specs=[
                pl.BlockSpec((tm, d_model), lambda i, f: (i, 0)),   # x tile (resident over f)
                pl.BlockSpec((d_model, tf), lambda i, f: (0, f)),   # w1 slab (streamed)
                pl.BlockSpec((nf, tf), lambda i, f: (0, 0)),        # b1, fully resident
                pl.BlockSpec((tf, d_model), lambda i, f: (f, 0)),   # w2 slab (streamed)
                pl.BlockSpec((1, d_model), lambda i, f: (0, 0)),    # b2, resident
            ],
            out_specs=pl.BlockSpec((tm, d_model), lambda i, f: (i, 0)),
            scratch_shapes=[pltpu.VMEM((tm, d_model), jnp.float32)],
        ),
        compiler_params=pltpu.CompilerParams(
            dimension_semantics=("parallel", "arbitrary"),
            vmem_limit_bytes=int(vmem_budget),
        ),
        cost_estimate=pl.CostEstimate(
            flops=flops, transcendentals=0, bytes_accessed=bytes_accessed),
    )(x2, w1, b1_2d, w2, b2_2d)

    return out.reshape(B, S, d_model)


def init_params(key, d_model, d_ff, dtype=jnp.float32):
    """Deterministic init mimicking nn.Linear defaults (U(-1/sqrt(fan_in), 1/sqrt(fan_in)))."""
    k1, k2, k3, k4 = jax.random.split(key, 4)
    bound1 = 1.0 / (d_model ** 0.5)
    bound2 = 1.0 / (d_ff ** 0.5)
    # Stored already transposed relative to PyTorch (weight.T) so the kernel does x @ w.
    w1 = jax.random.uniform(k1, (d_model, d_ff), dtype, -bound1, bound1)
    b1 = jax.random.uniform(k2, (d_ff,), dtype, -bound1, bound1)
    w2 = jax.random.uniform(k3, (d_ff, d_model), dtype, -bound2, bound2)
    b2 = jax.random.uniform(k4, (d_model,), dtype, -bound2, bound2)
    return w1, b1, w2, b2


if __name__ == "__main__":
    key = jax.random.PRNGKey(0)
    kx, kp = jax.random.split(key)

    # Small but tiling-exercising shapes: M=512 -> 2 row tiles, d_ff=1024 -> 2 reduction slabs.
    batch, seq, d_model, d_ff = 2, 256, 128, 1024
    drop_p = 0.1  # noqa: F841  (identity in eval mode)

    x = jax.random.normal(kx, (batch, seq, d_model), dtype=jnp.float32)
    w1, b1, w2, b2 = init_params(kp, d_model, d_ff)

    y = feed_forward(x, w1, b1, w2, b2)
    jax.block_until_ready(y)

    # Plain-JAX reference of the same math (highest precision for a stable baseline).
    x2 = x.reshape(batch * seq, d_model)
    h_ref = jnp.maximum(
        jnp.dot(x2, w1, precision=jax.lax.Precision.HIGHEST) + b1, 0.0)
    ref = (jnp.dot(h_ref, w2, precision=jax.lax.Precision.HIGHEST) + b2
           ).reshape(batch, seq, d_model)

    assert y.shape == (batch, seq, d_model)
    assert jnp.allclose(y, ref, atol=2e-3, rtol=2e-3), float(jnp.max(jnp.abs(y - ref)))

    print("KERNEL_OK")
</pallas_src>

<mosaic_0001>
module attributes {stable_mosaic.version = 11 : i64} {
  func.func @_ffn_kernel(%arg0: i32, %arg1: i32, %arg2: memref<256x128xf32, #tpu.memory_space<vmem>>, %arg3: memref<128x512xf32, #tpu.memory_space<vmem>>, %arg4: memref<2x512xf32, #tpu.memory_space<vmem>>, %arg5: memref<512x128xf32, #tpu.memory_space<vmem>>, %arg6: memref<1x128xf32, #tpu.memory_space<vmem>>, %arg7: memref<256x128xf32, #tpu.memory_space<vmem>>, %arg8: memref<256x128xf32, #tpu.memory_space<vmem>>) attributes {dimension_semantics = [#tpu.dimension_semantics<parallel>, #tpu.dimension_semantics<arbitrary>], iteration_bounds = array<i64: 2, 2>, scalar_prefetch = 0 : i64, scratch_operands = 1 : i64, tpu.core_type = #tpu.core_type<tc>, window_params = [{transform_indices = @transform_0, window_bounds = array<i64: 256, 128>}, {transform_indices = @transform_1, window_bounds = array<i64: 128, 512>}, {pipeline_mode = #tpu.pipeline_mode<synchronous>, transform_indices = @transform_2, window_bounds = array<i64: 2, 512>}, {transform_indices = @transform_3, window_bounds = array<i64: 512, 128>}, {pipeline_mode = #tpu.pipeline_mode<synchronous>, transform_indices = @transform_4, window_bounds = array<i64: 1, 128>}, {transform_indices = @transform_5, window_bounds = array<i64: 256, 128>}]} {
    %c0_i32 = arith.constant 0 : i32
    %0 = arith.cmpi eq, %arg1, %c0_i32 : i32
    %1 = arith.extui %0 : i1 to i32
    %c0_i32_0 = arith.constant 0 : i32
    %2 = arith.cmpi ne, %1, %c0_i32_0 : i32
    scf.if %2 {
      %cst_14 = arith.constant 0.000000e+00 : f32
      %20 = vector.broadcast %cst_14 : f32 to vector<256x128xf32>
      %c0_15 = arith.constant 0 : index
      %c0_16 = arith.constant 0 : index
      %21 = vector.load %arg8[%c0_15, %c0_16] : memref<256x128xf32, #tpu.memory_space<vmem>>, vector<256x128xf32>
      tpu.vector_store %arg8[%c0_15, %c0_16], %20 {strides = array<i32>} : memref<256x128xf32, #tpu.memory_space<vmem>>, vector<256x128xf32>,
    } else {
    }
    %c0 = arith.constant 0 : index
    %c0_1 = arith.constant 0 : index
    %3 = vector.load %arg2[%c0, %c0_1] : memref<256x128xf32, #tpu.memory_space<vmem>>, vector<256x128xf32>
    %c0_2 = arith.constant 0 : index
    %c0_3 = arith.constant 0 : index
    %4 = vector.load %arg3[%c0_2, %c0_3] : memref<128x512xf32, #tpu.memory_space<vmem>>, vector<128x512xf32>
    %cst = arith.constant dense<0.000000e+00> : vector<256x512xf32>
    %5 = tpu.matmul %3, %4, %cst {dimension_numbers = #tpu.dot_dimension_numbers<[1], [0], [0], [1], [0, 0, 1, 1], [], []>} : vector<256x128xf32>, vector<128x512xf32>, vector<256x512xf32> -> vector<256x512xf32>
    %6 = arith.index_cast %arg1 : i32 to index
    %c0_4 = arith.constant 0 : index
    %7 = vector.load %arg4[%6, %c0_4] : memref<2x512xf32, #tpu.memory_space<vmem>>, vector<1x512xf32>
    %8 = vector.broadcast %7 : vector<1x512xf32> to vector<256x512xf32>
    %9 = arith.addf %5, %8 : vector<256x512xf32>
    %cst_5 = arith.constant 0.000000e+00 : f32
    %10 = vector.broadcast %cst_5 : f32 to vector<256x512xf32>
    %11 = arith.maximumf %9, %10 : vector<256x512xf32>
    %c0_6 = arith.constant 0 : index
    %c0_7 = arith.constant 0 : index
    %12 = vector.load %arg8[%c0_6, %c0_7] : memref<256x128xf32, #tpu.memory_space<vmem>>, vector<256x128xf32>
    %c0_8 = arith.constant 0 : index
    %c0_9 = arith.constant 0 : index
    %13 = vector.load %arg5[%c0_8, %c0_9] : memref<512x128xf32, #tpu.memory_space<vmem>>, vector<512x128xf32>
    %cst_10 = arith.constant dense<0.000000e+00> : vector<256x128xf32>
    %14 = tpu.matmul %11, %13, %cst_10 {dimension_numbers = #tpu.dot_dimension_numbers<[1], [0], [0], [1], [0, 0, 1, 1], [], []>} : vector<256x512xf32>, vector<512x128xf32>, vector<256x128xf32> -> vector<256x128xf32>
    %15 = arith.addf %12, %14 : vector<256x128xf32>
    %c0_11 = arith.constant 0 : index
    %c0_12 = arith.constant 0 : index
    %16 = vector.load %arg8[%c0_11, %c0_12] : memref<256x128xf32, #tpu.memory_space<vmem>>, vector<256x128xf32>
    tpu.vector_store %arg8[%c0_11, %c0_12], %15 {strides = array<i32>} : memref<256x128xf32, #tpu.memory_space<vmem>>, vector<256x128xf32>,
    %c1_i32 = arith.constant 1 : i32
    %17 = arith.cmpi eq, %arg1, %c1_i32 : i32
    %18 = arith.extui %17 : i1 to i32
    %c0_i32_13 = arith.constant 0 : i32
    %19 = arith.cmpi ne, %18, %c0_i32_13 : i32
    scf.if %19 {
      %c0_14 = arith.constant 0 : index
      %c0_15 = arith.constant 0 : index
      %20 = vector.load %arg8[%c0_14, %c0_15] : memref<256x128xf32, #tpu.memory_space<vmem>>, vector<256x128xf32>
      %c0_16 = arith.constant 0 : index
      %c0_17 = arith.constant 0 : index
      %21 = vector.load %arg6[%c0_16, %c0_17] : memref<1x128xf32, #tpu.memory_space<vmem>>, vector<1x128xf32>
      %22 = vector.broadcast %21 : vector<1x128xf32> to vector<256x128xf32>
      %23 = arith.addf %20, %22 : vector<256x128xf32>
      %c0_18 = arith.constant 0 : index
      %c0_19 = arith.constant 0 : index
      %24 = vector.load %arg7[%c0_18, %c0_19] : memref<256x128xf32, #tpu.memory_space<vmem>>, vector<256x128xf32>
      tpu.vector_store %arg7[%c0_18, %c0_19], %23 {strides = array<i32>} : memref<256x128xf32, #tpu.memory_space<vmem>>, vector<256x128xf32>,
    } else {
    }
    return
  }
  func.func @transform_0(%arg0: i32, %arg1: i32) -> (i32, i32) {
    %c0_i32 = arith.constant 0 : i32
    %c0_i32_0 = arith.constant 0 : i32
    return %arg0, %c0_i32 : i32, i32
  }
  func.func @transform_1(%arg0: i32, %arg1: i32) -> (i32, i32) {
    %c0_i32 = arith.constant 0 : i32
    %c0_i32_0 = arith.constant 0 : i32
    return %c0_i32, %arg1 : i32, i32
  }
  func.func @transform_2(%arg0: i32, %arg1: i32) -> (i32, i32) {
    %c0_i32 = arith.constant 0 : i32
    %c0_i32_0 = arith.constant 0 : i32
    %c0_i32_1 = arith.constant 0 : i32
    return %c0_i32, %c0_i32_0 : i32, i32
  }
  func.func @transform_3(%arg0: i32, %arg1: i32) -> (i32, i32) {
    %c0_i32 = arith.constant 0 : i32
    %c0_i32_0 = arith.constant 0 : i32
    return %arg1, %c0_i32 : i32, i32
  }
  func.func @transform_4(%arg0: i32, %arg1: i32) -> (i32, i32) {
    %c0_i32 = arith.constant 0 : i32
    %c0_i32_0 = arith.constant 0 : i32
    %c0_i32_1 = arith.constant 0 : i32
    return %c0_i32, %c0_i32_0 : i32, i32
  }
  func.func @transform_5(%arg0: i32, %arg1: i32) -> (i32, i32) {
    %c0_i32 = arith.constant 0 : i32
    %c0_i32_0 = arith.constant 0 : i32
    return %arg0, %c0_i32 : i32, i32
  }
}

</mosaic_0001>

<llo_original>
// kernel: feed_forward.1
$region0: #{feed_forward.1}
  #allocation0 [shape = 'u32[]', space=smem, size = 0x4, offset = 0x4, fixed_abs, tag = 'smem constant byte address 0x4 - core index']
  #allocation1 [shape = 'u32[144,128]{1,0:T(1,128)}', space=vmem, size = 0x12000, scoped, tag = 'internal scratch']
  #allocation2 [shape = 'f32[256,128]{1,0:T(8,128)}', space=vmem, size = 0x20000, scoped, tag = 'scratch operand']
  %s0 = inlined_call_operand.hbm [shape: f32[512,128], index: 0, kind: input, shape index: {}]
  %s1 = inlined_call_operand.hbm [shape: f32[128,1024], index: 1, kind: input, shape index: {}]
  %s2 = inlined_call_operand.vmem [shape: f32[2,512], index: 2, kind: input, shape index: {}]
  %s3 = inlined_call_operand.hbm [shape: f32[1024,128], index: 3, kind: input, shape index: {}]
  %s4 = inlined_call_operand.vmem [shape: f32[1,128], index: 4, kind: input, shape index: {}]
  %s5 = inlined_call_operand.hbm [shape: f32[512,128], index: 5, kind: output, shape index: {}]
  %s6 = sld [smem:[#allocation0]]
  $region73: #{feed_forward.1} parent=0
    _
  %s8 = ssub.s32 1, %s6
  %s9 = scalar_select 0, %s8, %s6
  $region1: #{feed_forward.1} parent=0
    #allocation3 [shape = 'u8[262144]{0}', space=vmem, size = 0x40000, scoped, tag = 'input window, operand 0']
    #allocation4 [shape = 's32[2]{0}', space=sflag, size = 0x8, scoped, tag = 'scoped memory for feed_forward.1']
    #allocation5 [shape = 's32[2]{0}', space=sflag, size = 0x8, scoped, tag = 'scoped memory for feed_forward.1']
    #allocation6 [shape = 'u8[524288]{0}', space=vmem, size = 0x80000, scoped, tag = 'input window, operand 1']
    #allocation7 [shape = 's32[2]{0}', space=sflag, size = 0x8, scoped, tag = 'scoped memory for feed_forward.1']
    #allocation8 [shape = 'u8[524288]{0}', space=vmem, size = 0x80000, scoped, tag = 'input window, operand 3']
    #allocation9 [shape = 'u8[262144]{0}', space=vmem, size = 0x40000, scoped, tag = 'output window, operand 0']
    %10 = vsyncpa [#allocation4], 0
    %s11 = scalar_lea.sflag [#allocation4], 1
    %12 = vsyncpa %s11, 0
    %13 = vsyncpa [#allocation7], 0
    %s14 = scalar_lea.sflag [#allocation7], 1
    %15 = vsyncpa %s14, 0
    %16 = vsyncpa [#allocation5], 0
    %s17 = scalar_lea.sflag [#allocation5], 1
    %18 = vsyncpa %s17, 0
    loop: start=0, step=1, limit=6
    $region2: #{feed_forward.1} parent=1 // loop_pre_header
      _
    $region3: #{feed_forward.1} parent=1 // loop_header
      %s20 = sphi 0, %s24
      %p21 = scmp.ge.s32.totalorder %s20, 6
      %s27 = sphi 0, %s39
      %s28 = sphi 0, %s35
      %s29 = sphi 0, %s27
      %s30 = sphi 0, %s28
      %s31 = sphi 0, %s29
      %s32 = sphi 0, %s30
      %s42 = sphi 0, %s44
      %s45 = sphi 0, %s42
      %s46 = sphi 0, %s45
      %s62 = sphi 0, %s46
      %s68 = sphi 0, %s70
      %s71 = sphi 0, %s68
      %s72 = sphi 0, %s71
      %s88 = sphi 0, %s72
      %s92 = sphi 0, %s92
      %s94 = sphi 0, %s92
      %s95 = sphi 0, %s94
      %s109 = sphi 0, %s95
      %s115 = sphi 0, %s117
      %s118 = sphi 0, %s115
      %s119 = sphi 0, %s118
      %s135 = sphi 0, %s119
      %s139 = sphi 0, %s139
      %s141 = sphi 0, %s139
      %s142 = sphi 0, %s141
      %s156 = sphi 0, %s142
      %s162 = sphi 0, %s164
      %s165 = sphi 0, %s162
      %s166 = sphi 0, %s165
      %s182 = sphi 0, %s166
    $region4: #{feed_forward.1} parent=1 // loop_header_branch
      %23 = sbr.rel (%p21) target = $region8
    $region5: #{feed_forward.1} parent=1 // loop_body
      %s25 = ssub.s32 %s20, 1
      %s26 = ssub.s32 %s20, 2
      %s33 = sadd.s32 1, %s28
      %p34 = scmp.ge.s32.totalorder %s33, 2
      %s35 = scalar_select %p34, 0, %s33
      %s36 = sadd.s32 1, %s27
      %s37 = scalar_select %p34, %s36, %s27
      %p38 = scmp.ge.s32.totalorder %s37, 2
      %s39 = scalar_select %p38, 0, %s37
      %s40 = ssub.s32 %s27, %s39
      %p41 = scmp.eq.s32.totalorder %s40, 0
      %s43 = sadd.s32 %s42, 1
      %s44 = scalar_select %p41, %s42, %s43
      %p47 = pneg %p41
      %p48 = scmp.eq.s32.totalorder %s20, 3
      %p49 = por %p47, %p48
      %p50 = scmp.ne.s32.totalorder %s42, %s45
      %p51 = scmp.eq.s32.totalorder %s20, 0
      %p52 = por %p50, %p51
      %p53 = scmp.ne.s32.totalorder %s42, %s45
      %p54 = scmp.eq.s32.totalorder %s25, 3
      %p55 = por %p53, %p54
      %p56 = scmp.ne.s32.totalorder %s45, %s46
      %p57 = scmp.eq.s32.totalorder %s25, 0
      %p58 = por %p56, %p57
      %p59 = scmp.ne.s32.totalorder %s45, %s46
      %p60 = scmp.eq.s32.totalorder %s26, 3
      %p61 = por %p59, %p60
      %p63 = scmp.ne.s32.totalorder %s46, %s62
      %p64 = scmp.eq.s32.totalorder %s26, 0
      %p65 = por %p63, %p64
      %s66 = ssub.s32 %s28, %s35
      %p67 = scmp.eq.s32.totalorder %s66, 0
      %s69 = sadd.s32 %s68, 1
      %s70 = scalar_select %p67, %s68, %s69
      %p73 = pneg %p67
      %p74 = scmp.eq.s32.totalorder %s20, 3
      %p75 = por %p73, %p74
      %p76 = scmp.ne.s32.totalorder %s68, %s71
      %p77 = scmp.eq.s32.totalorder %s20, 0
      %p78 = por %p76, %p77
      %p79 = scmp.ne.s32.totalorder %s68, %s71
      %p80 = scmp.eq.s32.totalorder %s25, 3
      %p81 = por %p79, %p80
      %p82 = scmp.ne.s32.totalorder %s71, %s72
      %p83 = scmp.eq.s32.totalorder %s25, 0
      %p84 = por %p82, %p83
      %p85 = scmp.ne.s32.totalorder %s71, %s72
      %p86 = scmp.eq.s32.totalorder %s26, 3
      %p87 = por %p85, %p86
      %p89 = scmp.ne.s32.totalorder %s72, %s88
      %p90 = scmp.eq.s32.totalorder %s26, 0
      %p91 = por %p89, %p90
      %s93 = sadd.s32 %s92, 1
      %p96 = scmp.eq.s32.totalorder %s20, 3
      %p97 = scmp.ne.s32.totalorder %s92, %s94
      %p98 = scmp.eq.s32.totalorder %s20, 0
      %p99 = por %p97, %p98
      %p100 = scmp.ne.s32.totalorder %s92, %s94
      %p101 = scmp.eq.s32.totalorder %s25, 3
      %p102 = por %p100, %p101
      %p103 = scmp.ne.s32.totalorder %s94, %s95
      %p104 = scmp.eq.s32.totalorder %s25, 0
      %p105 = por %p103, %p104
      %p106 = scmp.ne.s32.totalorder %s94, %s95
      %p107 = scmp.eq.s32.totalorder %s26, 3
      %p108 = por %p106, %p107
      %p110 = scmp.ne.s32.totalorder %s95, %s109
      %p111 = scmp.eq.s32.totalorder %s26, 0
      %p112 = por %p110, %p111
      %s113 = ssub.s32 %s28, %s35
      %p114 = scmp.eq.s32.totalorder %s113, 0
      %s116 = sadd.s32 %s115, 1
      %s117 = scalar_select %p114, %s115, %s116
      %p120 = pneg %p114
      %p121 = scmp.eq.s32.totalorder %s20, 3
      %p122 = por %p120, %p121
      %p123 = scmp.ne.s32.totalorder %s115, %s118
      %p124 = scmp.eq.s32.totalorder %s20, 0
      %p125 = por %p123, %p124
      %p126 = scmp.ne.s32.totalorder %s115, %s118
      %p127 = scmp.eq.s32.totalorder %s25, 3
      %p128 = por %p126, %p127
      %p129 = scmp.ne.s32.totalorder %s118, %s119
      %p130 = scmp.eq.s32.totalorder %s25, 0
      %p131 = por %p129, %p130
      %p132 = scmp.ne.s32.totalorder %s118, %s119
      %p133 = scmp.eq.s32.totalorder %s26, 3
      %p134 = por %p132, %p133
      %p136 = scmp.ne.s32.totalorder %s119, %s135
      %p137 = scmp.eq.s32.totalorder %s26, 0
      %p138 = por %p136, %p137
      %s140 = sadd.s32 %s139, 1
      %p143 = scmp.eq.s32.totalorder %s20, 3
      %p144 = scmp.ne.s32.totalorder %s139, %s141
      %p145 = scmp.eq.s32.totalorder %s20, 0
      %p146 = por %p144, %p145
      %p147 = scmp.ne.s32.totalorder %s139, %s141
      %p148 = scmp.eq.s32.totalorder %s25, 3
      %p149 = por %p147, %p148
      %p150 = scmp.ne.s32.totalorder %s141, %s142
      %p151 = scmp.eq.s32.totalorder %s25, 0
      %p152 = por %p150, %p151
      %p153 = scmp.ne.s32.totalorder %s141, %s142
      %p154 = scmp.eq.s32.totalorder %s26, 3
      %p155 = por %p153, %p154
      %p157 = scmp.ne.s32.totalorder %s142, %s156
      %p158 = scmp.eq.s32.totalorder %s26, 0
      %p159 = por %p157, %p158
      %s160 = ssub.s32 %s27, %s39
      %p161 = scmp.eq.s32.totalorder %s160, 0
      %s163 = sadd.s32 %s162, 1
      %s164 = scalar_select %p161, %s162, %s163
      %p167 = pneg %p161
      %p168 = scmp.eq.s32.totalorder %s20, 3
      %p169 = por %p167, %p168
      %p170 = scmp.ne.s32.totalorder %s162, %s165
      %p171 = scmp.eq.s32.totalorder %s20, 0
      %p172 = por %p170, %p171
      %p173 = scmp.ne.s32.totalorder %s162, %s165
      %p174 = scmp.eq.s32.totalorder %s25, 3
      %p175 = por %p173, %p174
      %p176 = scmp.ne.s32.totalorder %s165, %s166
      %p177 = scmp.eq.s32.totalorder %s25, 0
      %p178 = por %p176, %p177
      %p179 = scmp.ne.s32.totalorder %s165, %s166
      %p180 = scmp.eq.s32.totalorder %s26, 3
      %p181 = por %p179, %p180
      %p183 = scmp.ne.s32.totalorder %s166, %s182
      %p184 = scmp.eq.s32.totalorder %s26, 0
      %p185 = por %p183, %p184
      %p186 = scmp.le.s32.totalorder 1, %s20
      %p187 = scmp.lt.s32.totalorder %s20, 5
      %p188 = pnand %p186, %p187
      %p189 = pneg %p188
      // Predicated region
      $region9: #{feed_forward.1} parent=5 // pred_check
        _
      $region10: #{feed_forward.1} parent=5 // pred_check_branch
        %191 = sbr.rel (%p188) target = $region12
      $region11: #{feed_forward.1} parent=5 // pred_region
        %s192 = ssub.s32 %s20, 1
        // Predicated region
        $region13: #{feed_forward.1} parent=11 // pred_check
          %p193 = pneg %p105
        $region14: #{feed_forward.1} parent=11 // pred_check_branch
          %195 = sbr.rel (%p193) target = $region16
        $region15: #{feed_forward.1} parent=11 // pred_region
          _
        $region16: #{feed_forward.1} parent=11 // pred_fallthru
          _
        // Predicated region
        $region17: #{feed_forward.1} parent=11 // pred_check
          %p196 = pneg %p152
        $region18: #{feed_forward.1} parent=11 // pred_check_branch
          %198 = sbr.rel (%p196) target = $region20
        $region19: #{feed_forward.1} parent=11 // pred_region
          _
        $region20: #{feed_forward.1} parent=11 // pred_fallthru
          _
      $region12: #{feed_forward.1} parent=5 // pred_fallthru
        _
      %p199 = scmp.lt.s32.totalorder %s20, 4
      // Predicated region
      $region21: #{feed_forward.1} parent=5 // pred_check
        %p200 = pneg %p199
      $region22: #{feed_forward.1} parent=5 // pred_check_branch
        %202 = sbr.rel (%p200) target = $region24
      $region23: #{feed_forward.1} parent=5 // pred_region
        // Predicated region
        $region25: #{feed_forward.1} parent=23 // pred_check
          %p203 = pneg %p52
        $region26: #{feed_forward.1} parent=23 // pred_check_branch
          %205 = sbr.rel (%p203) target = $region28
        $region27: #{feed_forward.1} parent=23 // pred_region
          %s206 = sand.u32 %s42, 1
          %s207 = scalar_lea.sflag [#allocation4], %s206
          %s208 = sand.u32 %s42, 1
          %s209 = smul.addr %s208, 256
          %s210 = scalar_lea.vmem [#allocation3], %s209
          %s211 = smul.u32 32, %s27
          %s213 = ssub.s32 4096, 4096
          %214 = vsyncadd %s207, %s213
          %s215 = smul.addr %s211, 128
          %s216 = scalar_lea.hbm %s0, %s215
          %s217 = sshll.u32 %s210, 4
          %s218 = int_to_ptr.vmem [resolvable:$true] %s217
          %223 = dma.hbm_to_vmem [thread:$0]  %s216, 4096, %s218, %s207, 128, 128, 8
        $region28: #{feed_forward.1} parent=23 // pred_fallthru
          _
        // Predicated region
        $region29: #{feed_forward.1} parent=23 // pred_check
          %p224 = pneg %p78
        $region30: #{feed_forward.1} parent=23 // pred_check_branch
          %226 = sbr.rel (%p224) target = $region32
        $region31: #{feed_forward.1} parent=23 // pred_region
          %s227 = sand.u32 %s20, 1
          %s228 = scalar_lea.sflag [#allocation7], %s227
          %s229 = sand.u32 %s68, 1
          %s230 = smul.addr %s229, 512
          %s231 = scalar_lea.vmem [#allocation6], %s230
          %s232 = smul.u32 4, %s28
          %s234 = ssub.s32 8192, 8192
          %235 = vsyncadd %s228, %s234
          %s236 = smul.addr %s232, 128
          %s237 = scalar_lea.hbm %s1, %s236
          %s238 = sshll.u32 %s231, 4
          %s239 = int_to_ptr.vmem [resolvable:$true] %s238
          %244 = dma.hbm_to_vmem [thread:$0]  %s237, 8192, %s239, %s228, 1024, 512, 32
        $region32: #{feed_forward.1} parent=23 // pred_fallthru
          _
        // Predicated region
        $region33: #{feed_forward.1} parent=23 // pred_check
          %p245 = pneg %p125
        $region34: #{feed_forward.1} parent=23 // pred_check_branch
          %247 = sbr.rel (%p245) target = $region36
        $region35: #{feed_forward.1} parent=23 // pred_region
          %s248 = sand.u32 %s20, 1
          %s249 = scalar_lea.sflag [#allocation7], %s248
          %s250 = sand.u32 %s115, 1
          %s251 = smul.addr %s250, 512
          %s252 = scalar_lea.vmem [#allocation8], %s251
          %s253 = smul.u32 64, %s28
          %s255 = ssub.s32 8192, 8192
          %256 = vsyncadd %s249, %s255
          %s257 = smul.addr %s253, 128
          %s258 = scalar_lea.hbm %s3, %s257
          %s259 = sshll.u32 %s252, 4
          %s260 = int_to_ptr.vmem [resolvable:$true] %s259
          %265 = dma.hbm_to_vmem [thread:$0]  %s258, 8192, %s260, %s249, 128, 128, 8
        $region36: #{feed_forward.1} parent=23 // pred_fallthru
          _
      $region24: #{feed_forward.1} parent=5 // pred_fallthru
        _
      %p266 = scmp.le.s32.totalorder 1, %s20
      %p267 = scmp.lt.s32.totalorder %s20, 5
      %p268 = pnand %p266, %p267
      %p269 = pneg %p268
      // Predicated region
      $region37: #{feed_forward.1} parent=5 // pred_check
        _
      $region38: #{feed_forward.1} parent=5 // pred_check_branch
        %271 = sbr.rel (%p268) target = $region40
      $region39: #{feed_forward.1} parent=5 // pred_region
        %s272 = ssub.s32 %s20, 1
        %s273 = sand.u32 %s45, 1
        %s274 = scalar_lea.sflag [#allocation4], %s273
        %s275 = sand.u32 %s45, 1
        %s276 = smul.addr %s275, 256
        %s277 = scalar_lea.vmem [#allocation3], %s276
        // Predicated region
        $region41: #{feed_forward.1} parent=39 // pred_check
          %p278 = pneg %p58
        $region42: #{feed_forward.1} parent=39 // pred_check_branch
          %280 = sbr.rel (%p278) target = $region44
        $region43: #{feed_forward.1} parent=39 // pred_region
          %281 = dma.done %s274, 4096
        $region44: #{feed_forward.1} parent=39 // pred_fallthru
          _
        %s282 = sand.u32 %s25, 1
        %s283 = scalar_lea.sflag [#allocation7], %s282
        %s284 = sand.u32 %s71, 1
        %s285 = smul.addr %s284, 512
        %s286 = scalar_lea.vmem [#allocation6], %s285
        // Predicated region
        $region45: #{feed_forward.1} parent=39 // pred_check
          %p287 = pneg %p84
        $region46: #{feed_forward.1} parent=39 // pred_check_branch
          %289 = sbr.rel (%p287) target = $region48
        $region47: #{feed_forward.1} parent=39 // pred_region
          %290 = dma.done %s283, 8192
        $region48: #{feed_forward.1} parent=39 // pred_fallthru
          _
        %s291 = sand.u32 %s25, 1
        %s292 = scalar_lea.sflag [#allocation7], %s291
        %s293 = sand.u32 %s118, 1
        %s294 = smul.addr %s293, 512
        %s295 = scalar_lea.vmem [#allocation8], %s294
        // Predicated region
        $region49: #{feed_forward.1} parent=39 // pred_check
          %p296 = pneg %p131
        $region50: #{feed_forward.1} parent=39 // pred_check_branch
          %298 = sbr.rel (%p296) target = $region52
        $region51: #{feed_forward.1} parent=39 // pred_region
          %299 = dma.done %s292, 8192
        $region52: #{feed_forward.1} parent=39 // pred_fallthru
          _
        %s300 = sand.u32 %s45, 1
        %s301 = scalar_lea.sflag [#allocation4], %s300
        %s302 = sand.u32 %s45, 1
        %s303 = smul.addr %s302, 256
        %s304 = scalar_lea.vmem [#allocation3], %s303
        %p305 = pneg %p58
        %p306 = pneg %p55
        %s307 = sand.u32 %s25, 1
        %s308 = scalar_lea.sflag [#allocation7], %s307
        %s309 = sand.u32 %s71, 1
        %s310 = smul.addr %s309, 512
        %s311 = scalar_lea.vmem [#allocation6], %s310
        %p312 = pneg %p84
        %p313 = pneg %p81
        %p314 = pneg %p105
        %p315 = pneg %p102
        %s316 = sand.u32 %s25, 1
        %s317 = scalar_lea.sflag [#allocation7], %s316
        %s318 = sand.u32 %s118, 1
        %s319 = smul.addr %s318, 512
        %s320 = scalar_lea.vmem [#allocation8], %s319
        %p321 = pneg %p131
        %p322 = pneg %p128
        %p323 = pneg %p152
        %p324 = pneg %p149
        %p325 = pneg %p178
        %p326 = pneg %p175
        %s327 = sand.u32 %s165, 1
        %s328 = scalar_lea.sflag [#allocation5], %s327
        %s329 = sand.u32 %s165, 1
        %s330 = smul.addr %s329, 256
        %s331 = scalar_lea.vmem [#allocation9], %s330
        %s332 = smul.u32 32, %s29
        %s333 = smul.u32 4, %s30
        %s334 = smul.u32 64, %s30
        %s335 = smul.u32 32, %s29
        %p336 = scmp.eq.s32.totalorder %s30, 0
        // Predicated region
        $region53: #{feed_forward.1} parent=39 // pred_check
          %p337 = pneg %p336
        $region54: #{feed_forward.1} parent=39 // pred_check_branch
          %339 = sbr.rel (%p337) target = $region56
        $region55: #{feed_forward.1} parent=39 // pred_region
          %340 = vst [vmem:[#allocation2] sm:$0xff] 0.0
          %341 = vst [vmem:[#allocation2 + $0x8] sm:$0xff] 0.0
          %342 = vst [vmem:[#allocation2 + $0x10] sm:$0xff] 0.0
          %343 = vst [vmem:[#allocation2 + $0x18] sm:$0xff] 0.0
          %344 = vst [vmem:[#allocation2 + $0x20] sm:$0xff] 0.0
          %345 = vst [vmem:[#allocation2 + $0x28] sm:$0xff] 0.0
          %346 = vst [vmem:[#allocation2 + $0x30] sm:$0xff] 0.0
          %347 = vst [vmem:[#allocation2 + $0x38] sm:$0xff] 0.0
          %348 = vst [vmem:[#allocation2 + $0x40] sm:$0xff] 0.0
          %349 = vst [vmem:[#allocation2 + $0x48] sm:$0xff] 0.0
          %350 = vst [vmem:[#allocation2 + $0x50] sm:$0xff] 0.0
          %351 = vst [vmem:[#allocation2 + $0x58] sm:$0xff] 0.0
          %352 = vst [vmem:[#allocation2 + $0x60] sm:$0xff] 0.0
          %353 = vst [vmem:[#allocation2 + $0x68] sm:$0xff] 0.0
          %354 = vst [vmem:[#allocation2 + $0x70] sm:$0xff] 0.0
          %355 = vst [vmem:[#allocation2 + $0x78] sm:$0xff] 0.0
          %356 = vst [vmem:[#allocation2 + $0x80] sm:$0xff] 0.0
          %357 = vst [vmem:[#allocation2 + $0x88] sm:$0xff] 0.0
          %358 = vst [vmem:[#allocation2 + $0x90] sm:$0xff] 0.0
          %359 = vst [vmem:[#allocation2 + $0x98] sm:$0xff] 0.0
          %360 = vst [vmem:[#allocation2 + $0xa0] sm:$0xff] 0.0
          %361 = vst [vmem:[#allocation2 + $0xa8] sm:$0xff] 0.0
          %362 = vst [vmem:[#allocation2 + $0xb0] sm:$0xff] 0.0
          %363 = vst [vmem:[#allocation2 + $0xb8] sm:$0xff] 0.0
          %364 = vst [vmem:[#allocation2 + $0xc0] sm:$0xff] 0.0
          %365 = vst [vmem:[#allocation2 + $0xc8] sm:$0xff] 0.0
          %366 = vst [vmem:[#allocation2 + $0xd0] sm:$0xff] 0.0
          %367 = vst [vmem:[#allocation2 + $0xd8] sm:$0xff] 0.0
          %368 = vst [vmem:[#allocation2 + $0xe0] sm:$0xff] 0.0
          %369 = vst [vmem:[#allocation2 + $0xe8] sm:$0xff] 0.0
          %370 = vst [vmem:[#allocation2 + $0xf0] sm:$0xff] 0.0
          %371 = vst [vmem:[#allocation2 + $0xf8] sm:$0xff] 0.0
        $region56: #{feed_forward.1} parent=39 // pred_fallthru
          _
        %v372 = vld [vmem:[%s277] sm:$0xff]
        %v373 = vld [vmem:[%s277 + $0x8] sm:$0xff]
        %v374 = vld [vmem:[%s277 + $0x10] sm:$0xff]
        %v375 = vld [vmem:[%s277 + $0x18] sm:$0xff]
        %v376 = vld [vmem:[%s277 + $0x20] sm:$0xff]
        %v377 = vld [vmem:[%s277 + $0x28] sm:$0xff]
        %v378 = vld [vmem:[%s277 + $0x30] sm:$0xff]
        %v379 = vld [vmem:[%s277 + $0x38] sm:$0xff]
        %v380 = vld [vmem:[%s277 + $0x40] sm:$0xff]
        %v381 = vld [vmem:[%s277 + $0x48] sm:$0xff]
        %v382 = vld [vmem:[%s277 + $0x50] sm:$0xff]
        %v383 = vld [vmem:[%s277 + $0x58] sm:$0xff]
        %v384 = vld [vmem:[%s277 + $0x60] sm:$0xff]
        %v385 = vld [vmem:[%s277 + $0x68] sm:$0xff]
        %v386 = vld [vmem:[%s277 + $0x70] sm:$0xff]
        %v387 = vld [vmem:[%s277 + $0x78] sm:$0xff]
        %v388 = vld [vmem:[%s277 + $0x80] sm:$0xff]
        %v389 = vld [vmem:[%s277 + $0x88] sm:$0xff]
        %v390 = vld [vmem:[%s277 + $0x90] sm:$0xff]
        %v391 = vld [vmem:[%s277 + $0x98] sm:$0xff]
        %v392 = vld [vmem:[%s277 + $0xa0] sm:$0xff]
        %v393 = vld [vmem:[%s277 + $0xa8] sm:$0xff]
        %v394 = vld [vmem:[%s277 + $0xb0] sm:$0xff]
        %v395 = vld [vmem:[%s277 + $0xb8] sm:$0xff]
        %v396 = vld [vmem:[%s277 + $0xc0] sm:$0xff]
        %v397 = vld [vmem:[%s277 + $0xc8] sm:$0xff]
        %v398 = vld [vmem:[%s277 + $0xd0] sm:$0xff]
        %v399 = vld [vmem:[%s277 + $0xd8] sm:$0xff]
        %v400 = vld [vmem:[%s277 + $0xe0] sm:$0xff]
        %v401 = vld [vmem:[%s277 + $0xe8] sm:$0xff]
        %v402 = vld [vmem:[%s277 + $0xf0] sm:$0xff]
        %v403 = vld [vmem:[%s277 + $0xf8] sm:$0xff]
        %v404 = vld [vmem:[%s286] sm:$0xff]
        %v405 = vld [vmem:[%s286 + $0x8] sm:$0xff]
        %v406 = vld [vmem:[%s286 + $0x10] sm:$0xff]
        %v407 = vld [vmem:[%s286 + $0x18] sm:$0xff]
        %v408 = vld [vmem:[%s286 + $0x20] sm:$0xff]
        %v409 = vld [vmem:[%s286 + $0x28] sm:$0xff]
        %v410 = vld [vmem:[%s286 + $0x30] sm:$0xff]
        %v411 = vld [vmem:[%s286 + $0x38] sm:$0xff]
        %v412 = vld [vmem:[%s286 + $0x40] sm:$0xff]
        %v413 = vld [vmem:[%s286 + $0x48] sm:$0xff]
        %v414 = vld [vmem:[%s286 + $0x50] sm:$0xff]
        %v415 = vld [vmem:[%s286 + $0x58] sm:$0xff]
        %v416 = vld [vmem:[%s286 + $0x60] sm:$0xff]
        %v417 = vld [vmem:[%s286 + $0x68] sm:$0xff]
        %v418 = vld [vmem:[%s286 + $0x70] sm:$0xff]
        %v419 = vld [vmem:[%s286 + $0x78] sm:$0xff]
        %v420 = vld [vmem:[%s286 + $0x80] sm:$0xff]
        %v421 = vld [vmem:[%s286 + $0x88] sm:$0xff]
        %v422 = vld [vmem:[%s286 + $0x90] sm:$0xff]
        %v423 = vld [vmem:[%s286 + $0x98] sm:$0xff]
        %v424 = vld [vmem:[%s286 + $0xa0] sm:$0xff]
        %v425 = vld [vmem:[%s286 + $0xa8] sm:$0xff]
        %v426 = vld [vmem:[%s286 + $0xb0] sm:$0xff]
        %v427 = vld [vmem:[%s286 + $0xb8] sm:$0xff]
        %v428 = vld [vmem:[%s286 + $0xc0] sm:$0xff]
        %v429 = vld [vmem:[%s286 + $0xc8] sm:$0xff]
        %v430 = vld [vmem:[%s286 + $0xd0] sm:$0xff]
        %v431 = vld [vmem:[%s286 + $0xd8] sm:$0xff]
        %v432 = vld [vmem:[%s286 + $0xe0] sm:$0xff]
        %v433 = vld [vmem:[%s286 + $0xe8] sm:$0xff]
        %v434 = vld [vmem:[%s286 + $0xf0] sm:$0xff]
        %v435 = vld [vmem:[%s286 + $0xf8] sm:$0xff]
        %v436 = vld [vmem:[%s286 + $0x100] sm:$0xff]
        %v437 = vld [vmem:[%s286 + $0x108] sm:$0xff]
        %v438 = vld [vmem:[%s286 + $0x110] sm:$0xff]
        %v439 = vld [vmem:[%s286 + $0x118] sm:$0xff]
        %v440 = vld [vmem:[%s286 + $0x120] sm:$0xff]
        %v441 = vld [vmem:[%s286 + $0x128] sm:$0xff]
        %v442 = vld [vmem:[%s286 + $0x130] sm:$0xff]
        %v443 = vld [vmem:[%s286 + $0x138] sm:$0xff]
        %v444 = vld [vmem:[%s286 + $0x140] sm:$0xff]
        %v445 = vld [vmem:[%s286 + $0x148] sm:$0xff]
        %v446 = vld [vmem:[%s286 + $0x150] sm:$0xff]
        %v447 = vld [vmem:[%s286 + $0x158] sm:$0xff]
        %v448 = vld [vmem:[%s286 + $0x160] sm:$0xff]
        %v449 = vld [vmem:[%s286 + $0x168] sm:$0xff]
        %v450 = vld [vmem:[%s286 + $0x170] sm:$0xff]
        %v451 = vld [vmem:[%s286 + $0x178] sm:$0xff]
        %v452 = vld [vmem:[%s286 + $0x180] sm:$0xff]
        %v453 = vld [vmem:[%s286 + $0x188] sm:$0xff]
        %v454 = vld [vmem:[%s286 + $0x190] sm:$0xff]
        %v455 = vld [vmem:[%s286 + $0x198] sm:$0xff]
        %v456 = vld [vmem:[%s286 + $0x1a0] sm:$0xff]
        %v457 = vld [vmem:[%s286 + $0x1a8] sm:$0xff]
        %v458 = vld [vmem:[%s286 + $0x1b0] sm:$0xff]
        %v459 = vld [vmem:[%s286 + $0x1b8] sm:$0xff]
        %v460 = vld [vmem:[%s286 + $0x1c0] sm:$0xff]
        %v461 = vld [vmem:[%s286 + $0x1c8] sm:$0xff]
        %v462 = vld [vmem:[%s286 + $0x1d0] sm:$0xff]
        %v463 = vld [vmem:[%s286 + $0x1d8] sm:$0xff]
        %v464 = vld [vmem:[%s286 + $0x1e0] sm:$0xff]
        %v465 = vld [vmem:[%s286 + $0x1e8] sm:$0xff]
        %v466 = vld [vmem:[%s286 + $0x1f0] sm:$0xff]
        %v467 = vld [vmem:[%s286 + $0x1f8] sm:$0xff]
        %s468 = sshra.s32 %s30, 1
        %s469 = sand.u32 %s30, 1
        %s470 = sshra.s32 %s30, 1
        %s471 = sand.u32 %s30, 1
        %s472 = smul.u32 %s468, 4
        %s473 = smul.u32 %s472, 2
        %s474 = sadd.s32 %s473, %s471
        %s475 = scalar_lea.vmem %s2, %s474
        %v476 = vld [vmem:[%s475] ss:$2 sm:$0xf]
        %v478 = vlaneseq
        %v479 = vshrl.u32 %v478, 7
        %v480 = vsub.s32 0, %v479
        %v481 = vrot.slane %v476, %v480
        %v482 = vlaneseq
        %v483 = vshrl.u32 %v482, 7
        %v484 = vsub.s32 1, %v483
        %v485 = vrot.slane %v476, %v484
        %v486 = vlaneseq
        %v487 = vshrl.u32 %v486, 7
        %v488 = vsub.s32 2, %v487
        %v489 = vrot.slane %v476, %v488
        %v490 = vlaneseq
        %v491 = vshrl.u32 %v490, 7
        %v492 = vsub.s32 3, %v491
        %v493 = vrot.slane %v476, %v492
        %498 = vmatprep.subr.mxu0 %v465
        %499 = vmatpush1.msra.mxu0 %v464
        %500 = vmatprep.subr.mxu0 %v461
        %501 = vmatpush1.msra.mxu0 %v460
        %502 = vmatprep.subr.mxu0 %v457
        %503 = vmatpush1.msra.mxu0 %v456
        %504 = vmatprep.subr.mxu0 %v453
        %505 = vmatpush1.msra.mxu0 %v452
        %506 = vmatprep.subr.mxu0 %v449
        %507 = vmatpush1.msra.mxu0 %v448
        %508 = vmatprep.subr.mxu0 %v445
        %509 = vmatpush1.msra.mxu0 %v444
        %510 = vmatprep.subr.mxu0 %v441
        %511 = vmatpush1.msra.mxu0 %v440
        %512 = vmatprep.subr.mxu0 %v437
        %513 = vmatpush1.msra.mxu0 %v436
        %514 = vmatprep.subr.mxu0 %v433
        %515 = vmatpush1.msra.mxu0 %v432
        %516 = vmatprep.subr.mxu0 %v429
        %517 = vmatpush1.msra.mxu0 %v428
        %518 = vmatprep.subr.mxu0 %v425
        %519 = vmatpush1.msra.mxu0 %v424
        %520 = vmatprep.subr.mxu0 %v421
        %521 = vmatpush1.msra.mxu0 %v420
        %522 = vmatprep.subr.mxu0 %v417
        %523 = vmatpush1.msra.mxu0 %v416
        %524 = vmatprep.subr.mxu0 %v413
        %525 = vmatpush1.msra.mxu0 %v412
        %526 = vmatprep.subr.mxu0 %v409
        %527 = vmatpush1.msra.mxu0 %v408
        %528 = vmatprep.subr.mxu0 %v405
        %529 = vmatpush1.msra.mxu0 %v404
        %530 = vmatprep.subr.mxu0 0.0
        %531 = vmatpush2.msra.mxu0 0.0
        %532 = vmatprep.subr.mxu0 0.0
        %533 = vmatpush2.msra.mxu0 0.0
        %534 = vmatprep.subr.mxu0 0.0
        %535 = vmatpush2.msra.mxu0 0.0
        %536 = vmatprep.subr.mxu0 0.0
        %537 = vmatpush2.msra.mxu0 0.0
        %538 = vmatprep.subr.mxu0 0.0
        %539 = vmatpush2.msra.mxu0 0.0
        %540 = vmatprep.subr.mxu0 0.0
        %541 = vmatpush2.msra.mxu0 0.0
        %542 = vmatprep.subr.mxu0 0.0
        %543 = vmatpush2.msra.mxu0 0.0
        %544 = vmatprep.subr.mxu0 0.0
        %545 = vmatpush2.msra.mxu0 0.0
        %546 = vmatprep.subr.mxu0 0.0
        %547 = vmatpush2.msra.mxu0 0.0
        %548 = vmatprep.subr.mxu0 0.0
        %549 = vmatpush2.msra.mxu0 0.0
        %550 = vmatprep.subr.mxu0 0.0
        %551 = vmatpush2.msra.mxu0 0.0
        %552 = vmatprep.subr.mxu0 0.0
        %553 = vmatpush2.msra.mxu0 0.0
        %554 = vmatprep.subr.mxu0 0.0
        %555 = vmatpush2.msra.mxu0 0.0
        %556 = vmatprep.subr.mxu0 0.0
        %557 = vmatpush2.msra.mxu0 0.0
        %558 = vmatprep.subr.mxu0 0.0
        %559 = vmatpush2.msra.mxu0 0.0
        %560 = vmatprep.subr.mxu0 0.0
        %561 = vmatpush2.msra.mxu0 0.0
        %562 = vmatprep.mubr.f32.mxu0 0.0
        %563 = vmatmul.mubr.f32.gmra.mxu0 %v372
        %v564 = vpop.f32.mrf.mxu0
        %v565 = vadd.f32 %v481, %v564
        %v566 = vpop.f32.mrf.mxu0
        %v567 = vadd.f32 %v485, %v566
        %568 = vmatprep.mubr.f32.mxu0 0.0
        %569 = vmatmul.mubr.f32.gmra.mxu0 %v373
        %v570 = vpop.f32.mrf.mxu0
        %v571 = vadd.f32 %v481, %v570
        %v572 = vpop.f32.mrf.mxu0
        %v573 = vadd.f32 %v485, %v572
        %574 = vmatprep.mubr.f32.mxu0 0.0
        %575 = vmatmul.mubr.f32.gmra.mxu0 %v374
        %v576 = vpop.f32.mrf.mxu0
        %v577 = vadd.f32 %v481, %v576
        %v578 = vpop.f32.mrf.mxu0
        %v579 = vadd.f32 %v485, %v578
        %580 = vmatprep.mubr.f32.mxu0 0.0
        %581 = vmatmul.mubr.f32.gmra.mxu0 %v375
        %v582 = vpop.f32.mrf.mxu0
        %v583 = vadd.f32 %v481, %v582
        %v584 = vpop.f32.mrf.mxu0
        %v585 = vadd.f32 %v485, %v584
        %586 = vmatprep.mubr.f32.mxu0 0.0
        %587 = vmatmul.mubr.f32.gmra.mxu0 %v376
        %v588 = vpop.f32.mrf.mxu0
        %v589 = vadd.f32 %v481, %v588
        %v590 = vpop.f32.mrf.mxu0
        %v591 = vadd.f32 %v485, %v590
        %592 = vmatprep.mubr.f32.mxu0 0.0
        %593 = vmatmul.mubr.f32.gmra.mxu0 %v377
        %v594 = vpop.f32.mrf.mxu0
        %v595 = vadd.f32 %v481, %v594
        %v596 = vpop.f32.mrf.mxu0
        %v597 = vadd.f32 %v485, %v596
        %598 = vmatprep.mubr.f32.mxu0 0.0
        %599 = vmatmul.mubr.f32.gmra.mxu0 %v378
        %v600 = vpop.f32.mrf.mxu0
        %v601 = vadd.f32 %v481, %v600
        %v602 = vpop.f32.mrf.mxu0
        %v603 = vadd.f32 %v485, %v602
        %604 = vmatprep.mubr.f32.mxu0 0.0
        %605 = vmatmul.mubr.f32.gmra.mxu0 %v379
        %v606 = vpop.f32.mrf.mxu0
        %v607 = vadd.f32 %v481, %v606
        %v608 = vpop.f32.mrf.mxu0
        %v609 = vadd.f32 %v485, %v608
        %610 = vmatprep.mubr.f32.mxu0 0.0
        %611 = vmatmul.mubr.f32.gmra.mxu0 %v380
        %v612 = vpop.f32.mrf.mxu0
        %v613 = vadd.f32 %v481, %v612
        %v614 = vpop.f32.mrf.mxu0
        %v615 = vadd.f32 %v485, %v614
        %616 = vmatprep.mubr.f32.mxu0 0.0
        %617 = vmatmul.mubr.f32.gmra.mxu0 %v381
        %v618 = vpop.f32.mrf.mxu0
        %v619 = vadd.f32 %v481, %v618
        %v620 = vpop.f32.mrf.mxu0
        %v621 = vadd.f32 %v485, %v620
        %622 = vmatprep.mubr.f32.mxu0 0.0
        %623 = vmatmul.mubr.f32.gmra.mxu0 %v382
        %v624 = vpop.f32.mrf.mxu0
        %v625 = vadd.f32 %v481, %v624
        %v626 = vpop.f32.mrf.mxu0
        %v627 = vadd.f32 %v485, %v626
        %628 = vmatprep.mubr.f32.mxu0 0.0
        %629 = vmatmul.mubr.f32.gmra.mxu0 %v383
        %v630 = vpop.f32.mrf.mxu0
        %v631 = vadd.f32 %v481, %v630
        %v632 = vpop.f32.mrf.mxu0
        %v633 = vadd.f32 %v485, %v632
        %634 = vmatprep.mubr.f32.mxu0 0.0
        %635 = vmatmul.mubr.f32.gmra.mxu0 %v384
        %v636 = vpop.f32.mrf.mxu0
        %v637 = vadd.f32 %v481, %v636
        %v638 = vpop.f32.mrf.mxu0
        %v639 = vadd.f32 %v485, %v638
        %640 = vmatprep.mubr.f32.mxu0 0.0
        %641 = vmatmul.mubr.f32.gmra.mxu0 %v385
        %v642 = vpop.f32.mrf.mxu0
        %v643 = vadd.f32 %v481, %v642
        %v644 = vpop.f32.mrf.mxu0
        %v645 = vadd.f32 %v485, %v644
        %646 = vmatprep.mubr.f32.mxu0 0.0
        %647 = vmatmul.mubr.f32.gmra.mxu0 %v386
        %v648 = vpop.f32.mrf.mxu0
        %v649 = vadd.f32 %v481, %v648
        %v650 = vpop.f32.mrf.mxu0
        %v651 = vadd.f32 %v485, %v650
        %652 = vmatprep.mubr.f32.mxu0 0.0
        %653 = vmatmul.mubr.f32.gmra.mxu0 %v387
        %v654 = vpop.f32.mrf.mxu0
        %v655 = vadd.f32 %v481, %v654
        %v656 = vpop.f32.mrf.mxu0
        %v657 = vadd.f32 %v485, %v656
        %658 = vmatprep.mubr.f32.mxu0 0.0
        %659 = vmatmul.mubr.f32.gmra.mxu0 %v388
        %v660 = vpop.f32.mrf.mxu0
        %v661 = vadd.f32 %v481, %v660
        %v662 = vpop.f32.mrf.mxu0
        %v663 = vadd.f32 %v485, %v662
        %664 = vmatprep.mubr.f32.mxu0 0.0
        %665 = vmatmul.mubr.f32.gmra.mxu0 %v389
        %v666 = vpop.f32.mrf.mxu0
        %v667 = vadd.f32 %v481, %v666
        %v668 = vpop.f32.mrf.mxu0
        %v669 = vadd.f32 %v485, %v668
        %670 = vmatprep.mubr.f32.mxu0 0.0
        %671 = vmatmul.mubr.f32.gmra.mxu0 %v390
        %v672 = vpop.f32.mrf.mxu0
        %v673 = vadd.f32 %v481, %v672
        %v674 = vpop.f32.mrf.mxu0
        %v675 = vadd.f32 %v485, %v674
        %676 = vmatprep.mubr.f32.mxu0 0.0
        %677 = vmatmul.mubr.f32.gmra.mxu0 %v391
        %v678 = vpop.f32.mrf.mxu0
        %v679 = vadd.f32 %v481, %v678
        %v680 = vpop.f32.mrf.mxu0
        %v681 = vadd.f32 %v485, %v680
        %682 = vmatprep.mubr.f32.mxu0 0.0
        %683 = vmatmul.mubr.f32.gmra.mxu0 %v392
        %v684 = vpop.f32.mrf.mxu0
        %v685 = vadd.f32 %v481, %v684
        %v686 = vpop.f32.mrf.mxu0
        %v687 = vadd.f32 %v485, %v686
        %688 = vmatprep.mubr.f32.mxu0 0.0
        %689 = vmatmul.mubr.f32.gmra.mxu0 %v393
        %v690 = vpop.f32.mrf.mxu0
        %v691 = vadd.f32 %v481, %v690
        %v692 = vpop.f32.mrf.mxu0
        %v693 = vadd.f32 %v485, %v692
        %694 = vmatprep.mubr.f32.mxu0 0.0
        %695 = vmatmul.mubr.f32.gmra.mxu0 %v394
        %v696 = vpop.f32.mrf.mxu0
        %v697 = vadd.f32 %v481, %v696
        %v698 = vpop.f32.mrf.mxu0
        %v699 = vadd.f32 %v485, %v698
        %700 = vmatprep.mubr.f32.mxu0 0.0
        %701 = vmatmul.mubr.f32.gmra.mxu0 %v395
        %v702 = vpop.f32.mrf.mxu0
        %v703 = vadd.f32 %v481, %v702
        %v704 = vpop.f32.mrf.mxu0
        %v705 = vadd.f32 %v485, %v704
        %706 = vmatprep.mubr.f32.mxu0 0.0
        %707 = vmatmul.mubr.f32.gmra.mxu0 %v396
        %v708 = vpop.f32.mrf.mxu0
        %v709 = vadd.f32 %v481, %v708
        %v710 = vpop.f32.mrf.mxu0
        %v711 = vadd.f32 %v485, %v710
        %712 = vmatprep.mubr.f32.mxu0 0.0
        %713 = vmatmul.mubr.f32.gmra.mxu0 %v397
        %v714 = vpop.f32.mrf.mxu0
        %v715 = vadd.f32 %v481, %v714
        %v716 = vpop.f32.mrf.mxu0
        %v717 = vadd.f32 %v485, %v716
        %718 = vmatprep.mubr.f32.mxu0 0.0
        %719 = vmatmul.mubr.f32.gmra.mxu0 %v398
        %v720 = vpop.f32.mrf.mxu0
        %v721 = vadd.f32 %v481, %v720
        %v722 = vpop.f32.mrf.mxu0
        %v723 = vadd.f32 %v485, %v722
        %724 = vmatprep.mubr.f32.mxu0 0.0
        %725 = vmatmul.mubr.f32.gmra.mxu0 %v399
        %v726 = vpop.f32.mrf.mxu0
        %v727 = vadd.f32 %v481, %v726
        %v728 = vpop.f32.mrf.mxu0
        %v729 = vadd.f32 %v485, %v728
        %730 = vmatprep.mubr.f32.mxu0 0.0
        %731 = vmatmul.mubr.f32.gmra.mxu0 %v400
        %v732 = vpop.f32.mrf.mxu0
        %v733 = vadd.f32 %v481, %v732
        %v734 = vpop.f32.mrf.mxu0
        %v735 = vadd.f32 %v485, %v734
        %736 = vmatprep.mubr.f32.mxu0 0.0
        %737 = vmatmul.mubr.f32.gmra.mxu0 %v401
        %v738 = vpop.f32.mrf.mxu0
        %v739 = vadd.f32 %v481, %v738
        %v740 = vpop.f32.mrf.mxu0
        %v741 = vadd.f32 %v485, %v740
        %742 = vmatprep.mubr.f32.mxu0 0.0
        %743 = vmatmul.mubr.f32.gmra.mxu0 %v402
        %v744 = vpop.f32.mrf.mxu0
        %v745 = vadd.f32 %v481, %v744
        %v746 = vpop.f32.mrf.mxu0
        %v747 = vadd.f32 %v485, %v746
        %748 = vmatprep.mubr.f32.mxu0 0.0
        %749 = vmatmul.mubr.f32.gmra.mxu0 %v403
        %v750 = vpop.f32.mrf.mxu0
        %v751 = vadd.f32 %v481, %v750
        %v752 = vpop.f32.mrf.mxu0
        %v753 = vadd.f32 %v485, %v752
        %754 = vdwg.mxu0
        %755 = vmatprep.subr.mxu0 %v467
        %756 = vmatpush1.msra.mxu0 %v466
        %757 = vmatprep.subr.mxu0 %v463
        %758 = vmatpush1.msra.mxu0 %v462
        %759 = vmatprep.subr.mxu0 %v459
        %760 = vmatpush1.msra.mxu0 %v458
        %761 = vmatprep.subr.mxu0 %v455
        %762 = vmatpush1.msra.mxu0 %v454
        %763 = vmatprep.subr.mxu0 %v451
        %764 = vmatpush1.msra.mxu0 %v450
        %765 = vmatprep.subr.mxu0 %v447
        %766 = vmatpush1.msra.mxu0 %v446
        %767 = vmatprep.subr.mxu0 %v443
        %768 = vmatpush1.msra.mxu0 %v442
        %769 = vmatprep.subr.mxu0 %v439
        %770 = vmatpush1.msra.mxu0 %v438
        %771 = vmatprep.subr.mxu0 %v435
        %772 = vmatpush1.msra.mxu0 %v434
        %773 = vmatprep.subr.mxu0 %v431
        %774 = vmatpush1.msra.mxu0 %v430
        %775 = vmatprep.subr.mxu0 %v427
        %776 = vmatpush1.msra.mxu0 %v426
        %777 = vmatprep.subr.mxu0 %v423
        %778 = vmatpush1.msra.mxu0 %v422
        %779 = vmatprep.subr.mxu0 %v419
        %780 = vmatpush1.msra.mxu0 %v418
        %781 = vmatprep.subr.mxu0 %v415
        %782 = vmatpush1.msra.mxu0 %v414
        %783 = vmatprep.subr.mxu0 %v411
        %784 = vmatpush1.msra.mxu0 %v410
        %785 = vmatprep.subr.mxu0 %v407
        %786 = vmatpush1.msra.mxu0 %v406
        %787 = vmatprep.subr.mxu0 0.0
        %788 = vmatpush2.msra.mxu0 0.0
        %789 = vmatprep.subr.mxu0 0.0
        %790 = vmatpush2.msra.mxu0 0.0
        %791 = vmatprep.subr.mxu0 0.0
        %792 = vmatpush2.msra.mxu0 0.0
        %793 = vmatprep.subr.mxu0 0.0
        %794 = vmatpush2.msra.mxu0 0.0
        %795 = vmatprep.subr.mxu0 0.0
        %796 = vmatpush2.msra.mxu0 0.0
        %797 = vmatprep.subr.mxu0 0.0
        %798 = vmatpush2.msra.mxu0 0.0
        %799 = vmatprep.subr.mxu0 0.0
        %800 = vmatpush2.msra.mxu0 0.0
        %801 = vmatprep.subr.mxu0 0.0
        %802 = vmatpush2.msra.mxu0 0.0
        %803 = vmatprep.subr.mxu0 0.0
        %804 = vmatpush2.msra.mxu0 0.0
        %805 = vmatprep.subr.mxu0 0.0
        %806 = vmatpush2.msra.mxu0 0.0
        %807 = vmatprep.subr.mxu0 0.0
        %808 = vmatpush2.msra.mxu0 0.0
        %809 = vmatprep.subr.mxu0 0.0
        %810 = vmatpush2.msra.mxu0 0.0
        %811 = vmatprep.subr.mxu0 0.0
        %812 = vmatpush2.msra.mxu0 0.0
        %813 = vmatprep.subr.mxu0 0.0
        %814 = vmatpush2.msra.mxu0 0.0
        %815 = vmatprep.subr.mxu0 0.0
        %816 = vmatpush2.msra.mxu0 0.0
        %817 = vmatprep.subr.mxu0 0.0
        %818 = vmatpush2.msra.mxu0 0.0
        %819 = vmatprep.mubr.f32.mxu0 0.0
        %820 = vmatmul.mubr.f32.gmra.mxu0 %v372
        %v821 = vpop.f32.mrf.mxu0
        %v822 = vadd.f32 %v489, %v821
        %v823 = vpop.f32.mrf.mxu0
        %v824 = vadd.f32 %v493, %v823
        %825 = vmatprep.mubr.f32.mxu0 0.0
        %826 = vmatmul.mubr.f32.gmra.mxu0 %v373
        %v827 = vpop.f32.mrf.mxu0
        %v828 = vadd.f32 %v489, %v827
        %v829 = vpop.f32.mrf.mxu0
        %v830 = vadd.f32 %v493, %v829
        %831 = vmatprep.mubr.f32.mxu0 0.0
        %832 = vmatmul.mubr.f32.gmra.mxu0 %v374
        %v833 = vpop.f32.mrf.mxu0
        %v834 = vadd.f32 %v489, %v833
        %v835 = vpop.f32.mrf.mxu0
        %v836 = vadd.f32 %v493, %v835
        %837 = vmatprep.mubr.f32.mxu0 0.0
        %838 = vmatmul.mubr.f32.gmra.mxu0 %v375
        %v839 = vpop.f32.mrf.mxu0
        %v840 = vadd.f32 %v489, %v839
        %v841 = vpop.f32.mrf.mxu0
        %v842 = vadd.f32 %v493, %v841
        %843 = vmatprep.mubr.f32.mxu0 0.0
        %844 = vmatmul.mubr.f32.gmra.mxu0 %v376
        %v845 = vpop.f32.mrf.mxu0
        %v846 = vadd.f32 %v489, %v845
        %v847 = vpop.f32.mrf.mxu0
        %v848 = vadd.f32 %v493, %v847
        %849 = vmatprep.mubr.f32.mxu0 0.0
        %850 = vmatmul.mubr.f32.gmra.mxu0 %v377
        %v851 = vpop.f32.mrf.mxu0
        %v852 = vadd.f32 %v489, %v851
        %v853 = vpop.f32.mrf.mxu0
        %v854 = vadd.f32 %v493, %v853
        %855 = vmatprep.mubr.f32.mxu0 0.0
        %856 = vmatmul.mubr.f32.gmra.mxu0 %v378
        %v857 = vpop.f32.mrf.mxu0
        %v858 = vadd.f32 %v489, %v857
        %v859 = vpop.f32.mrf.mxu0
        %v860 = vadd.f32 %v493, %v859
        %861 = vmatprep.mubr.f32.mxu0 0.0
        %862 = vmatmul.mubr.f32.gmra.mxu0 %v379
        %v863 = vpop.f32.mrf.mxu0
        %v864 = vadd.f32 %v489, %v863
        %v865 = vpop.f32.mrf.mxu0
        %v866 = vadd.f32 %v493, %v865
        %867 = vmatprep.mubr.f32.mxu0 0.0
        %868 = vmatmul.mubr.f32.gmra.mxu0 %v380
        %v869 = vpop.f32.mrf.mxu0
        %v870 = vadd.f32 %v489, %v869
        %v871 = vpop.f32.mrf.mxu0
        %v872 = vadd.f32 %v493, %v871
        %873 = vmatprep.mubr.f32.mxu0 0.0
        %874 = vmatmul.mubr.f32.gmra.mxu0 %v381
        %v875 = vpop.f32.mrf.mxu0
        %v876 = vadd.f32 %v489, %v875
        %v877 = vpop.f32.mrf.mxu0
        %v878 = vadd.f32 %v493, %v877
        %879 = vmatprep.mubr.f32.mxu0 0.0
        %880 = vmatmul.mubr.f32.gmra.mxu0 %v382
        %v881 = vpop.f32.mrf.mxu0
        %v882 = vadd.f32 %v489, %v881
        %v883 = vpop.f32.mrf.mxu0
        %v884 = vadd.f32 %v493, %v883
        %885 = vmatprep.mubr.f32.mxu0 0.0
        %886 = vmatmul.mubr.f32.gmra.mxu0 %v383
        %v887 = vpop.f32.mrf.mxu0
        %v888 = vadd.f32 %v489, %v887
        %v889 = vpop.f32.mrf.mxu0
        %v890 = vadd.f32 %v493, %v889
        %891 = vmatprep.mubr.f32.mxu0 0.0
        %892 = vmatmul.mubr.f32.gmra.mxu0 %v384
        %v893 = vpop.f32.mrf.mxu0
        %v894 = vadd.f32 %v489, %v893
        %v895 = vpop.f32.mrf.mxu0
        %v896 = vadd.f32 %v493, %v895
        %897 = vmatprep.mubr.f32.mxu0 0.0
        %898 = vmatmul.mubr.f32.gmra.mxu0 %v385
        %v899 = vpop.f32.mrf.mxu0
        %v900 = vadd.f32 %v489, %v899
        %v901 = vpop.f32.mrf.mxu0
        %v902 = vadd.f32 %v493, %v901
        %903 = vmatprep.mubr.f32.mxu0 0.0
        %904 = vmatmul.mubr.f32.gmra.mxu0 %v386
        %v905 = vpop.f32.mrf.mxu0
        %v906 = vadd.f32 %v489, %v905
        %v907 = vpop.f32.mrf.mxu0
        %v908 = vadd.f32 %v493, %v907
        %909 = vmatprep.mubr.f32.mxu0 0.0
        %910 = vmatmul.mubr.f32.gmra.mxu0 %v387
        %v911 = vpop.f32.mrf.mxu0
        %v912 = vadd.f32 %v489, %v911
        %v913 = vpop.f32.mrf.mxu0
        %v914 = vadd.f32 %v493, %v913
        %915 = vmatprep.mubr.f32.mxu0 0.0
        %916 = vmatmul.mubr.f32.gmra.mxu0 %v388
        %v917 = vpop.f32.mrf.mxu0
        %v918 = vadd.f32 %v489, %v917
        %v919 = vpop.f32.mrf.mxu0
        %v920 = vadd.f32 %v493, %v919
        %921 = vmatprep.mubr.f32.mxu0 0.0
        %922 = vmatmul.mubr.f32.gmra.mxu0 %v389
        %v923 = vpop.f32.mrf.mxu0
        %v924 = vadd.f32 %v489, %v923
        %v925 = vpop.f32.mrf.mxu0
        %v926 = vadd.f32 %v493, %v925
        %927 = vmatprep.mubr.f32.mxu0 0.0
        %928 = vmatmul.mubr.f32.gmra.mxu0 %v390
        %v929 = vpop.f32.mrf.mxu0
        %v930 = vadd.f32 %v489, %v929
        %v931 = vpop.f32.mrf.mxu0
        %v932 = vadd.f32 %v493, %v931
        %933 = vmatprep.mubr.f32.mxu0 0.0
        %934 = vmatmul.mubr.f32.gmra.mxu0 %v391
        %v935 = vpop.f32.mrf.mxu0
        %v936 = vadd.f32 %v489, %v935
        %v937 = vpop.f32.mrf.mxu0
        %v938 = vadd.f32 %v493, %v937
        %939 = vmatprep.mubr.f32.mxu0 0.0
        %940 = vmatmul.mubr.f32.gmra.mxu0 %v392
        %v941 = vpop.f32.mrf.mxu0
        %v942 = vadd.f32 %v489, %v941
        %v943 = vpop.f32.mrf.mxu0
        %v944 = vadd.f32 %v493, %v943
        %945 = vmatprep.mubr.f32.mxu0 0.0
        %946 = vmatmul.mubr.f32.gmra.mxu0 %v393
        %v947 = vpop.f32.mrf.mxu0
        %v948 = vadd.f32 %v489, %v947
        %v949 = vpop.f32.mrf.mxu0
        %v950 = vadd.f32 %v493, %v949
        %951 = vmatprep.mubr.f32.mxu0 0.0
        %952 = vmatmul.mubr.f32.gmra.mxu0 %v394
        %v953 = vpop.f32.mrf.mxu0
        %v954 = vadd.f32 %v489, %v953
        %v955 = vpop.f32.mrf.mxu0
        %v956 = vadd.f32 %v493, %v955
        %957 = vmatprep.mubr.f32.mxu0 0.0
        %958 = vmatmul.mubr.f32.gmra.mxu0 %v395
        %v959 = vpop.f32.mrf.mxu0
        %v960 = vadd.f32 %v489, %v959
        %v961 = vpop.f32.mrf.mxu0
        %v962 = vadd.f32 %v493, %v961
        %963 = vmatprep.mubr.f32.mxu0 0.0
        %964 = vmatmul.mubr.f32.gmra.mxu0 %v396
        %v965 = vpop.f32.mrf.mxu0
        %v966 = vadd.f32 %v489, %v965
        %v967 = vpop.f32.mrf.mxu0
        %v968 = vadd.f32 %v493, %v967
        %969 = vmatprep.mubr.f32.mxu0 0.0
        %970 = vmatmul.mubr.f32.gmra.mxu0 %v397
        %v971 = vpop.f32.mrf.mxu0
        %v972 = vadd.f32 %v489, %v971
        %v973 = vpop.f32.mrf.mxu0
        %v974 = vadd.f32 %v493, %v973
        %975 = vmatprep.mubr.f32.mxu0 0.0
        %976 = vmatmul.mubr.f32.gmra.mxu0 %v398
        %v977 = vpop.f32.mrf.mxu0
        %v978 = vadd.f32 %v489, %v977
        %v979 = vpop.f32.mrf.mxu0
        %v980 = vadd.f32 %v493, %v979
        %981 = vmatprep.mubr.f32.mxu0 0.0
        %982 = vmatmul.mubr.f32.gmra.mxu0 %v399
        %v983 = vpop.f32.mrf.mxu0
        %v984 = vadd.f32 %v489, %v983
        %v985 = vpop.f32.mrf.mxu0
        %v986 = vadd.f32 %v493, %v985
        %987 = vmatprep.mubr.f32.mxu0 0.0
        %988 = vmatmul.mubr.f32.gmra.mxu0 %v400
        %v989 = vpop.f32.mrf.mxu0
        %v990 = vadd.f32 %v489, %v989
        %v991 = vpop.f32.mrf.mxu0
        %v992 = vadd.f32 %v493, %v991
        %993 = vmatprep.mubr.f32.mxu0 0.0
        %994 = vmatmul.mubr.f32.gmra.mxu0 %v401
        %v995 = vpop.f32.mrf.mxu0
        %v996 = vadd.f32 %v489, %v995
        %v997 = vpop.f32.mrf.mxu0
        %v998 = vadd.f32 %v493, %v997
        %999 = vmatprep.mubr.f32.mxu0 0.0
        %1000 = vmatmul.mubr.f32.gmra.mxu0 %v402
        %v1001 = vpop.f32.mrf.mxu0
        %v1002 = vadd.f32 %v489, %v1001
        %v1003 = vpop.f32.mrf.mxu0
        %v1004 = vadd.f32 %v493, %v1003
        %1005 = vmatprep.mubr.f32.mxu0 0.0
        %1006 = vmatmul.mubr.f32.gmra.mxu0 %v403
        %v1007 = vpop.f32.mrf.mxu0
        %v1008 = vadd.f32 %v489, %v1007
        %v1009 = vpop.f32.mrf.mxu0
        %v1010 = vadd.f32 %v493, %v1009
        %1011 = vdwg.mxu0
        %v1012 = vmax.f32 %v565, 0.0
        %v1013 = vmax.f32 %v567, 0.0
        %v1014 = vmax.f32 %v822, 0.0
        %v1015 = vmax.f32 %v824, 0.0
        %v1016 = vmax.f32 %v571, 0.0
        %v1017 = vmax.f32 %v573, 0.0
        %v1018 = vmax.f32 %v828, 0.0
        %v1019 = vmax.f32 %v830, 0.0
        %v1020 = vmax.f32 %v577, 0.0
        %v1021 = vmax.f32 %v579, 0.0
        %v1022 = vmax.f32 %v834, 0.0
        %v1023 = vmax.f32 %v836, 0.0
        %v1024 = vmax.f32 %v583, 0.0
        %v1025 = vmax.f32 %v585, 0.0
        %v1026 = vmax.f32 %v840, 0.0
        %v1027 = vmax.f32 %v842, 0.0
        %v1028 = vmax.f32 %v589, 0.0
        %v1029 = vmax.f32 %v591, 0.0
        %v1030 = vmax.f32 %v846, 0.0
        %v1031 = vmax.f32 %v848, 0.0
        %v1032 = vmax.f32 %v595, 0.0
        %v1033 = vmax.f32 %v597, 0.0
        %v1034 = vmax.f32 %v852, 0.0
        %v1035 = vmax.f32 %v854, 0.0
        %v1036 = vmax.f32 %v601, 0.0
        %v1037 = vmax.f32 %v603, 0.0
        %v1038 = vmax.f32 %v858, 0.0
        %v1039 = vmax.f32 %v860, 0.0
        %v1040 = vmax.f32 %v607, 0.0
        %v1041 = vmax.f32 %v609, 0.0
        %v1042 = vmax.f32 %v864, 0.0
        %v1043 = vmax.f32 %v866, 0.0
        %v1044 = vmax.f32 %v613, 0.0
        %v1045 = vmax.f32 %v615, 0.0
        %v1046 = vmax.f32 %v870, 0.0
        %v1047 = vmax.f32 %v872, 0.0
        %v1048 = vmax.f32 %v619, 0.0
        %v1049 = vmax.f32 %v621, 0.0
        %v1050 = vmax.f32 %v876, 0.0
        %v1051 = vmax.f32 %v878, 0.0
        %v1052 = vmax.f32 %v625, 0.0
        %v1053 = vmax.f32 %v627, 0.0
        %v1054 = vmax.f32 %v882, 0.0
        %v1055 = vmax.f32 %v884, 0.0
        %v1056 = vmax.f32 %v631, 0.0
        %v1057 = vmax.f32 %v633, 0.0
        %v1058 = vmax.f32 %v888, 0.0
        %v1059 = vmax.f32 %v890, 0.0
        %v1060 = vmax.f32 %v637, 0.0
        %v1061 = vmax.f32 %v639, 0.0
        %v1062 = vmax.f32 %v894, 0.0
        %v1063 = vmax.f32 %v896, 0.0
        %v1064 = vmax.f32 %v643, 0.0
        %v1065 = vmax.f32 %v645, 0.0
        %v1066 = vmax.f32 %v900, 0.0
        %v1067 = vmax.f32 %v902, 0.0
        %v1068 = vmax.f32 %v649, 0.0
        %v1069 = vmax.f32 %v651, 0.0
        %v1070 = vmax.f32 %v906, 0.0
        %v1071 = vmax.f32 %v908, 0.0
        %v1072 = vmax.f32 %v655, 0.0
        %v1073 = vmax.f32 %v657, 0.0
        %v1074 = vmax.f32 %v912, 0.0
        %v1075 = vmax.f32 %v914, 0.0
        %v1076 = vmax.f32 %v661, 0.0
        %v1077 = vmax.f32 %v663, 0.0
        %v1078 = vmax.f32 %v918, 0.0
        %v1079 = vmax.f32 %v920, 0.0
        %v1080 = vmax.f32 %v667, 0.0
        %v1081 = vmax.f32 %v669, 0.0
        %v1082 = vmax.f32 %v924, 0.0
        %v1083 = vmax.f32 %v926, 0.0
        %v1084 = vmax.f32 %v673, 0.0
        %v1085 = vmax.f32 %v675, 0.0
        %v1086 = vmax.f32 %v930, 0.0
        %v1087 = vmax.f32 %v932, 0.0
        %v1088 = vmax.f32 %v679, 0.0
        %v1089 = vmax.f32 %v681, 0.0
        %v1090 = vmax.f32 %v936, 0.0
        %v1091 = vmax.f32 %v938, 0.0
        %v1092 = vmax.f32 %v685, 0.0
        %v1093 = vmax.f32 %v687, 0.0
        %v1094 = vmax.f32 %v942, 0.0
        %v1095 = vmax.f32 %v944, 0.0
        %v1096 = vmax.f32 %v691, 0.0
        %v1097 = vmax.f32 %v693, 0.0
        %v1098 = vmax.f32 %v948, 0.0
        %v1099 = vmax.f32 %v950, 0.0
        %v1100 = vmax.f32 %v697, 0.0
        %v1101 = vmax.f32 %v699, 0.0
        %v1102 = vmax.f32 %v954, 0.0
        %v1103 = vmax.f32 %v956, 0.0
        %v1104 = vmax.f32 %v703, 0.0
        %v1105 = vmax.f32 %v705, 0.0
        %v1106 = vmax.f32 %v960, 0.0
        %v1107 = vmax.f32 %v962, 0.0
        %v1108 = vmax.f32 %v709, 0.0
        %v1109 = vmax.f32 %v711, 0.0
        %v1110 = vmax.f32 %v966, 0.0
        %v1111 = vmax.f32 %v968, 0.0
        %v1112 = vmax.f32 %v715, 0.0
        %v1113 = vmax.f32 %v717, 0.0
        %v1114 = vmax.f32 %v972, 0.0
        %v1115 = vmax.f32 %v974, 0.0
        %v1116 = vmax.f32 %v721, 0.0
        %v1117 = vmax.f32 %v723, 0.0
        %v1118 = vmax.f32 %v978, 0.0
        %v1119 = vmax.f32 %v980, 0.0
        %v1120 = vmax.f32 %v727, 0.0
        %v1121 = vmax.f32 %v729, 0.0
        %v1122 = vmax.f32 %v984, 0.0
        %v1123 = vmax.f32 %v986, 0.0
        %v1124 = vmax.f32 %v733, 0.0
        %v1125 = vmax.f32 %v735, 0.0
        %v1126 = vmax.f32 %v990, 0.0
        %v1127 = vmax.f32 %v992, 0.0
        %v1128 = vmax.f32 %v739, 0.0
        %v1129 = vmax.f32 %v741, 0.0
        %v1130 = vmax.f32 %v996, 0.0
        %v1131 = vmax.f32 %v998, 0.0
        %v1132 = vmax.f32 %v745, 0.0
        %v1133 = vmax.f32 %v747, 0.0
        %v1134 = vmax.f32 %v1002, 0.0
        %v1135 = vmax.f32 %v1004, 0.0
        %v1136 = vmax.f32 %v751, 0.0
        %v1137 = vmax.f32 %v753, 0.0
        %v1138 = vmax.f32 %v1008, 0.0
        %v1139 = vmax.f32 %v1010, 0.0
        %v1140 = vld [vmem:[#allocation2] sm:$0xff]
        %v1141 = vld [vmem:[#allocation2 + $0x8] sm:$0xff]
        %v1142 = vld [vmem:[#allocation2 + $0x10] sm:$0xff]
        %v1143 = vld [vmem:[#allocation2 + $0x18] sm:$0xff]
        %v1144 = vld [vmem:[#allocation2 + $0x20] sm:$0xff]
        %v1145 = vld [vmem:[#allocation2 + $0x28] sm:$0xff]
        %v1146 = vld [vmem:[#allocation2 + $0x30] sm:$0xff]
        %v1147 = vld [vmem:[#allocation2 + $0x38] sm:$0xff]
        %v1148 = vld [vmem:[#allocation2 + $0x40] sm:$0xff]
        %v1149 = vld [vmem:[#allocation2 + $0x48] sm:$0xff]
        %v1150 = vld [vmem:[#allocation2 + $0x50] sm:$0xff]
        %v1151 = vld [vmem:[#allocation2 + $0x58] sm:$0xff]
        %v1152 = vld [vmem:[#allocation2 + $0x60] sm:$0xff]
        %v1153 = vld [vmem:[#allocation2 + $0x68] sm:$0xff]
        %v1154 = vld [vmem:[#allocation2 + $0x70] sm:$0xff]
        %v1155 = vld [vmem:[#allocation2 + $0x78] sm:$0xff]
        %v1156 = vld [vmem:[#allocation2 + $0x80] sm:$0xff]
        %v1157 = vld [vmem:[#allocation2 + $0x88] sm:$0xff]
        %v1158 = vld [vmem:[#allocation2 + $0x90] sm:$0xff]
        %v1159 = vld [vmem:[#allocation2 + $0x98] sm:$0xff]
        %v1160 = vld [vmem:[#allocation2 + $0xa0] sm:$0xff]
        %v1161 = vld [vmem:[#allocation2 + $0xa8] sm:$0xff]
        %v1162 = vld [vmem:[#allocation2 + $0xb0] sm:$0xff]
        %v1163 = vld [vmem:[#allocation2 + $0xb8] sm:$0xff]
        %v1164 = vld [vmem:[#allocation2 + $0xc0] sm:$0xff]
        %v1165 = vld [vmem:[#allocation2 + $0xc8] sm:$0xff]
        %v1166 = vld [vmem:[#allocation2 + $0xd0] sm:$0xff]
        %v1167 = vld [vmem:[#allocation2 + $0xd8] sm:$0xff]
        %v1168 = vld [vmem:[#allocation2 + $0xe0] sm:$0xff]
        %v1169 = vld [vmem:[#allocation2 + $0xe8] sm:$0xff]
        %v1170 = vld [vmem:[#allocation2 + $0xf0] sm:$0xff]
        %v1171 = vld [vmem:[#allocation2 + $0xf8] sm:$0xff]
        %v1172 = vld [vmem:[%s295] sm:$0xff]
        %v1173 = vld [vmem:[%s295 + $0x8] sm:$0xff]
        %v1174 = vld [vmem:[%s295 + $0x10] sm:$0xff]
        %v1175 = vld [vmem:[%s295 + $0x18] sm:$0xff]
        %v1176 = vld [vmem:[%s295 + $0x20] sm:$0xff]
        %v1177 = vld [vmem:[%s295 + $0x28] sm:$0xff]
        %v1178 = vld [vmem:[%s295 + $0x30] sm:$0xff]
        %v1179 = vld [vmem:[%s295 + $0x38] sm:$0xff]
        %v1180 = vld [vmem:[%s295 + $0x40] sm:$0xff]
        %v1181 = vld [vmem:[%s295 + $0x48] sm:$0xff]
        %v1182 = vld [vmem:[%s295 + $0x50] sm:$0xff]
        %v1183 = vld [vmem:[%s295 + $0x58] sm:$0xff]
        %v1184 = vld [vmem:[%s295 + $0x60] sm:$0xff]
        %v1185 = vld [vmem:[%s295 + $0x68] sm:$0xff]
        %v1186 = vld [vmem:[%s295 + $0x70] sm:$0xff]
        %v1187 = vld [vmem:[%s295 + $0x78] sm:$0xff]
        %v1188 = vld [vmem:[%s295 + $0x80] sm:$0xff]
        %v1189 = vld [vmem:[%s295 + $0x88] sm:$0xff]
        %v1190 = vld [vmem:[%s295 + $0x90] sm:$0xff]
        %v1191 = vld [vmem:[%s295 + $0x98] sm:$0xff]
        %v1192 = vld [vmem:[%s295 + $0xa0] sm:$0xff]
        %v1193 = vld [vmem:[%s295 + $0xa8] sm:$0xff]
        %v1194 = vld [vmem:[%s295 + $0xb0] sm:$0xff]
        %v1195 = vld [vmem:[%s295 + $0xb8] sm:$0xff]
        %v1196 = vld [vmem:[%s295 + $0xc0] sm:$0xff]
        %v1197 = vld [vmem:[%s295 + $0xc8] sm:$0xff]
        %v1198 = vld [vmem:[%s295 + $0xd0] sm:$0xff]
        %v1199 = vld [vmem:[%s295 + $0xd8] sm:$0xff]
        %v1200 = vld [vmem:[%s295 + $0xe0] sm:$0xff]
        %v1201 = vld [vmem:[%s295 + $0xe8] sm:$0xff]
        %v1202 = vld [vmem:[%s295 + $0xf0] sm:$0xff]
        %v1203 = vld [vmem:[%s295 + $0xf8] sm:$0xff]
        %v1204 = vld [vmem:[%s295 + $0x100] sm:$0xff]
        %v1205 = vld [vmem:[%s295 + $0x108] sm:$0xff]
        %v1206 = vld [vmem:[%s295 + $0x110] sm:$0xff]
        %v1207 = vld [vmem:[%s295 + $0x118] sm:$0xff]
        %v1208 = vld [vmem:[%s295 + $0x120] sm:$0xff]
        %v1209 = vld [vmem:[%s295 + $0x128] sm:$0xff]
        %v1210 = vld [vmem:[%s295 + $0x130] sm:$0xff]
        %v1211 = vld [vmem:[%s295 + $0x138] sm:$0xff]
        %v1212 = vld [vmem:[%s295 + $0x140] sm:$0xff]
        %v1213 = vld [vmem:[%s295 + $0x148] sm:$0xff]
        %v1214 = vld [vmem:[%s295 + $0x150] sm:$0xff]
        %v1215 = vld [vmem:[%s295 + $0x158] sm:$0xff]
        %v1216 = vld [vmem:[%s295 + $0x160] sm:$0xff]
        %v1217 = vld [vmem:[%s295 + $0x168] sm:$0xff]
        %v1218 = vld [vmem:[%s295 + $0x170] sm:$0xff]
        %v1219 = vld [vmem:[%s295 + $0x178] sm:$0xff]
        %v1220 = vld [vmem:[%s295 + $0x180] sm:$0xff]
        %v1221 = vld [vmem:[%s295 + $0x188] sm:$0xff]
        %v1222 = vld [vmem:[%s295 + $0x190] sm:$0xff]
        %v1223 = vld [vmem:[%s295 + $0x198] sm:$0xff]
        %v1224 = vld [vmem:[%s295 + $0x1a0] sm:$0xff]
        %v1225 = vld [vmem:[%s295 + $0x1a8] sm:$0xff]
        %v1226 = vld [vmem:[%s295 + $0x1b0] sm:$0xff]
        %v1227 = vld [vmem:[%s295 + $0x1b8] sm:$0xff]
        %v1228 = vld [vmem:[%s295 + $0x1c0] sm:$0xff]
        %v1229 = vld [vmem:[%s295 + $0x1c8] sm:$0xff]
        %v1230 = vld [vmem:[%s295 + $0x1d0] sm:$0xff]
        %v1231 = vld [vmem:[%s295 + $0x1d8] sm:$0xff]
        %v1232 = vld [vmem:[%s295 + $0x1e0] sm:$0xff]
        %v1233 = vld [vmem:[%s295 + $0x1e8] sm:$0xff]
        %v1234 = vld [vmem:[%s295 + $0x1f0] sm:$0xff]
        %v1235 = vld [vmem:[%s295 + $0x1f8] sm:$0xff]
        %1236 = vmatprep.subr.mxu0 0.0
        %1237 = vmatpush1.msra.mxu0 %v1187
        %1238 = vmatprep.subr.mxu0 0.0
        %1239 = vmatpush1.msra.mxu0 %v1186
        %1240 = vmatprep.subr.mxu0 0.0
        %1241 = vmatpush1.msra.mxu0 %v1185
        %1242 = vmatprep.subr.mxu0 0.0
        %1243 = vmatpush1.msra.mxu0 %v1184
        %1244 = vmatprep.subr.mxu0 0.0
        %1245 = vmatpush1.msra.mxu0 %v1183
        %1246 = vmatprep.subr.mxu0 0.0
        %1247 = vmatpush1.msra.mxu0 %v1182
        %1248 = vmatprep.subr.mxu0 0.0
        %1249 = vmatpush1.msra.mxu0 %v1181
        %1250 = vmatprep.subr.mxu0 0.0
        %1251 = vmatpush1.msra.mxu0 %v1180
        %1252 = vmatprep.subr.mxu0 0.0
        %1253 = vmatpush1.msra.mxu0 %v1179
        %1254 = vmatprep.subr.mxu0 0.0
        %1255 = vmatpush1.msra.mxu0 %v1178
        %1256 = vmatprep.subr.mxu0 0.0
        %1257 = vmatpush1.msra.mxu0 %v1177
        %1258 = vmatprep.subr.mxu0 0.0
        %1259 = vmatpush1.msra.mxu0 %v1176
        %1260 = vmatprep.subr.mxu0 0.0
        %1261 = vmatpush1.msra.mxu0 %v1175
        %1262 = vmatprep.subr.mxu0 0.0
        %1263 = vmatpush1.msra.mxu0 %v1174
        %1264 = vmatprep.subr.mxu0 0.0
        %1265 = vmatpush1.msra.mxu0 %v1173
        %1266 = vmatprep.subr.mxu0 0.0
        %1267 = vmatpush1.msra.mxu0 %v1172
        %1268 = vmatprep.subr.mxu0 0.0
        %1269 = vmatpush2.msra.mxu0 %v1203
        %1270 = vmatprep.subr.mxu0 0.0
        %1271 = vmatpush2.msra.mxu0 %v1202
        %1272 = vmatprep.subr.mxu0 0.0
        %1273 = vmatpush2.msra.mxu0 %v1201
        %1274 = vmatprep.subr.mxu0 0.0
        %1275 = vmatpush2.msra.mxu0 %v1200
        %1276 = vmatprep.subr.mxu0 0.0
        %1277 = vmatpush2.msra.mxu0 %v1199
        %1278 = vmatprep.subr.mxu0 0.0
        %1279 = vmatpush2.msra.mxu0 %v1198
        %1280 = vmatprep.subr.mxu0 0.0
        %1281 = vmatpush2.msra.mxu0 %v1197
        %1282 = vmatprep.subr.mxu0 0.0
        %1283 = vmatpush2.msra.mxu0 %v1196
        %1284 = vmatprep.subr.mxu0 0.0
        %1285 = vmatpush2.msra.mxu0 %v1195
        %1286 = vmatprep.subr.mxu0 0.0
        %1287 = vmatpush2.msra.mxu0 %v1194
        %1288 = vmatprep.subr.mxu0 0.0
        %1289 = vmatpush2.msra.mxu0 %v1193
        %1290 = vmatprep.subr.mxu0 0.0
        %1291 = vmatpush2.msra.mxu0 %v1192
        %1292 = vmatprep.subr.mxu0 0.0
        %1293 = vmatpush2.msra.mxu0 %v1191
        %1294 = vmatprep.subr.mxu0 0.0
        %1295 = vmatpush2.msra.mxu0 %v1190
        %1296 = vmatprep.subr.mxu0 0.0
        %1297 = vmatpush2.msra.mxu0 %v1189
        %1298 = vmatprep.subr.mxu0 0.0
        %1299 = vmatpush2.msra.mxu0 %v1188
        %1300 = vmatprep.mubr.f32.mxu0 %v1013
        %1301 = vmatmul.mubr.f32.gmra.mxu0 %v1012
        %v1302 = vpop.f32.mrf.mxu0
        %v1303 = vadd.f32 0.0, %v1302
        %v1304 = vpop.f32.mrf.mxu0
        %1305 = vmatprep.mubr.f32.mxu0 %v1017
        %1306 = vmatmul.mubr.f32.gmra.mxu0 %v1016
        %v1307 = vpop.f32.mrf.mxu0
        %v1308 = vadd.f32 0.0, %v1307
        %v1309 = vpop.f32.mrf.mxu0
        %1310 = vmatprep.mubr.f32.mxu0 %v1021
        %1311 = vmatmul.mubr.f32.gmra.mxu0 %v1020
        %v1312 = vpop.f32.mrf.mxu0
        %v1313 = vadd.f32 0.0, %v1312
        %v1314 = vpop.f32.mrf.mxu0
        %1315 = vmatprep.mubr.f32.mxu0 %v1025
        %1316 = vmatmul.mubr.f32.gmra.mxu0 %v1024
        %v1317 = vpop.f32.mrf.mxu0
        %v1318 = vadd.f32 0.0, %v1317
        %v1319 = vpop.f32.mrf.mxu0
        %1320 = vmatprep.mubr.f32.mxu0 %v1029
        %1321 = vmatmul.mubr.f32.gmra.mxu0 %v1028
        %v1322 = vpop.f32.mrf.mxu0
        %v1323 = vadd.f32 0.0, %v1322
        %v1324 = vpop.f32.mrf.mxu0
        %1325 = vmatprep.mubr.f32.mxu0 %v1033
        %1326 = vmatmul.mubr.f32.gmra.mxu0 %v1032
        %v1327 = vpop.f32.mrf.mxu0
        %v1328 = vadd.f32 0.0, %v1327
        %v1329 = vpop.f32.mrf.mxu0
        %1330 = vmatprep.mubr.f32.mxu0 %v1037
        %1331 = vmatmul.mubr.f32.gmra.mxu0 %v1036
        %v1332 = vpop.f32.mrf.mxu0
        %v1333 = vadd.f32 0.0, %v1332
        %v1334 = vpop.f32.mrf.mxu0
        %1335 = vmatprep.mubr.f32.mxu0 %v1041
        %1336 = vmatmul.mubr.f32.gmra.mxu0 %v1040
        %v1337 = vpop.f32.mrf.mxu0
        %v1338 = vadd.f32 0.0, %v1337
        %v1339 = vpop.f32.mrf.mxu0
        %1340 = vmatprep.mubr.f32.mxu0 %v1045
        %1341 = vmatmul.mubr.f32.gmra.mxu0 %v1044
        %v1342 = vpop.f32.mrf.mxu0
        %v1343 = vadd.f32 0.0, %v1342
        %v1344 = vpop.f32.mrf.mxu0
        %1345 = vmatprep.mubr.f32.mxu0 %v1049
        %1346 = vmatmul.mubr.f32.gmra.mxu0 %v1048
        %v1347 = vpop.f32.mrf.mxu0
        %v1348 = vadd.f32 0.0, %v1347
        %v1349 = vpop.f32.mrf.mxu0
        %1350 = vmatprep.mubr.f32.mxu0 %v1053
        %1351 = vmatmul.mubr.f32.gmra.mxu0 %v1052
        %v1352 = vpop.f32.mrf.mxu0
        %v1353 = vadd.f32 0.0, %v1352
        %v1354 = vpop.f32.mrf.mxu0
        %1355 = vmatprep.mubr.f32.mxu0 %v1057
        %1356 = vmatmul.mubr.f32.gmra.mxu0 %v1056
        %v1357 = vpop.f32.mrf.mxu0
        %v1358 = vadd.f32 0.0, %v1357
        %v1359 = vpop.f32.mrf.mxu0
        %1360 = vmatprep.mubr.f32.mxu0 %v1061
        %1361 = vmatmul.mubr.f32.gmra.mxu0 %v1060
        %v1362 = vpop.f32.mrf.mxu0
        %v1363 = vadd.f32 0.0, %v1362
        %v1364 = vpop.f32.mrf.mxu0
        %1365 = vmatprep.mubr.f32.mxu0 %v1065
        %1366 = vmatmul.mubr.f32.gmra.mxu0 %v1064
        %v1367 = vpop.f32.mrf.mxu0
        %v1368 = vadd.f32 0.0, %v1367
        %v1369 = vpop.f32.mrf.mxu0
        %1370 = vmatprep.mubr.f32.mxu0 %v1069
        %1371 = vmatmul.mubr.f32.gmra.mxu0 %v1068
        %v1372 = vpop.f32.mrf.mxu0
        %v1373 = vadd.f32 0.0, %v1372
        %v1374 = vpop.f32.mrf.mxu0
        %1375 = vmatprep.mubr.f32.mxu0 %v1073
        %1376 = vmatmul.mubr.f32.gmra.mxu0 %v1072
        %v1377 = vpop.f32.mrf.mxu0
        %v1378 = vadd.f32 0.0, %v1377
        %v1379 = vpop.f32.mrf.mxu0
        %1380 = vmatprep.mubr.f32.mxu0 %v1077
        %1381 = vmatmul.mubr.f32.gmra.mxu0 %v1076
        %v1382 = vpop.f32.mrf.mxu0
        %v1383 = vadd.f32 0.0, %v1382
        %v1384 = vpop.f32.mrf.mxu0
        %1385 = vmatprep.mubr.f32.mxu0 %v1081
        %1386 = vmatmul.mubr.f32.gmra.mxu0 %v1080
        %v1387 = vpop.f32.mrf.mxu0
        %v1388 = vadd.f32 0.0, %v1387
        %v1389 = vpop.f32.mrf.mxu0
        %1390 = vmatprep.mubr.f32.mxu0 %v1085
        %1391 = vmatmul.mubr.f32.gmra.mxu0 %v1084
        %v1392 = vpop.f32.mrf.mxu0
        %v1393 = vadd.f32 0.0, %v1392
        %v1394 = vpop.f32.mrf.mxu0
        %1395 = vmatprep.mubr.f32.mxu0 %v1089
        %1396 = vmatmul.mubr.f32.gmra.mxu0 %v1088
        %v1397 = vpop.f32.mrf.mxu0
        %v1398 = vadd.f32 0.0, %v1397
        %v1399 = vpop.f32.mrf.mxu0
        %1400 = vmatprep.mubr.f32.mxu0 %v1093
        %1401 = vmatmul.mubr.f32.gmra.mxu0 %v1092
        %v1402 = vpop.f32.mrf.mxu0
        %v1403 = vadd.f32 0.0, %v1402
        %v1404 = vpop.f32.mrf.mxu0
        %1405 = vmatprep.mubr.f32.mxu0 %v1097
        %1406 = vmatmul.mubr.f32.gmra.mxu0 %v1096
        %v1407 = vpop.f32.mrf.mxu0
        %v1408 = vadd.f32 0.0, %v1407
        %v1409 = vpop.f32.mrf.mxu0
        %1410 = vmatprep.mubr.f32.mxu0 %v1101
        %1411 = vmatmul.mubr.f32.gmra.mxu0 %v1100
        %v1412 = vpop.f32.mrf.mxu0
        %v1413 = vadd.f32 0.0, %v1412
        %v1414 = vpop.f32.mrf.mxu0
        %1415 = vmatprep.mubr.f32.mxu0 %v1105
        %1416 = vmatmul.mubr.f32.gmra.mxu0 %v1104
        %v1417 = vpop.f32.mrf.mxu0
        %v1418 = vadd.f32 0.0, %v1417
        %v1419 = vpop.f32.mrf.mxu0
        %1420 = vmatprep.mubr.f32.mxu0 %v1109
        %1421 = vmatmul.mubr.f32.gmra.mxu0 %v1108
        %v1422 = vpop.f32.mrf.mxu0
        %v1423 = vadd.f32 0.0, %v1422
        %v1424 = vpop.f32.mrf.mxu0
        %1425 = vmatprep.mubr.f32.mxu0 %v1113
        %1426 = vmatmul.mubr.f32.gmra.mxu0 %v1112
        %v1427 = vpop.f32.mrf.mxu0
        %v1428 = vadd.f32 0.0, %v1427
        %v1429 = vpop.f32.mrf.mxu0
        %1430 = vmatprep.mubr.f32.mxu0 %v1117
        %1431 = vmatmul.mubr.f32.gmra.mxu0 %v1116
        %v1432 = vpop.f32.mrf.mxu0
        %v1433 = vadd.f32 0.0, %v1432
        %v1434 = vpop.f32.mrf.mxu0
        %1435 = vmatprep.mubr.f32.mxu0 %v1121
        %1436 = vmatmul.mubr.f32.gmra.mxu0 %v1120
        %v1437 = vpop.f32.mrf.mxu0
        %v1438 = vadd.f32 0.0, %v1437
        %v1439 = vpop.f32.mrf.mxu0
        %1440 = vmatprep.mubr.f32.mxu0 %v1125
        %1441 = vmatmul.mubr.f32.gmra.mxu0 %v1124
        %v1442 = vpop.f32.mrf.mxu0
        %v1443 = vadd.f32 0.0, %v1442
        %v1444 = vpop.f32.mrf.mxu0
        %1445 = vmatprep.mubr.f32.mxu0 %v1129
        %1446 = vmatmul.mubr.f32.gmra.mxu0 %v1128
        %v1447 = vpop.f32.mrf.mxu0
        %v1448 = vadd.f32 0.0, %v1447
        %v1449 = vpop.f32.mrf.mxu0
        %1450 = vmatprep.mubr.f32.mxu0 %v1133
        %1451 = vmatmul.mubr.f32.gmra.mxu0 %v1132
        %v1452 = vpop.f32.mrf.mxu0
        %v1453 = vadd.f32 0.0, %v1452
        %v1454 = vpop.f32.mrf.mxu0
        %1455 = vmatprep.mubr.f32.mxu0 %v1137
        %1456 = vmatmul.mubr.f32.gmra.mxu0 %v1136
        %v1457 = vpop.f32.mrf.mxu0
        %v1458 = vadd.f32 0.0, %v1457
        %v1459 = vpop.f32.mrf.mxu0
        %1460 = vdwg.mxu0
        %1461 = vmatprep.subr.mxu0 0.0
        %1462 = vmatpush1.msra.mxu0 %v1219
        %1463 = vmatprep.subr.mxu0 0.0
        %1464 = vmatpush1.msra.mxu0 %v1218
        %1465 = vmatprep.subr.mxu0 0.0
        %1466 = vmatpush1.msra.mxu0 %v1217
        %1467 = vmatprep.subr.mxu0 0.0
        %1468 = vmatpush1.msra.mxu0 %v1216
        %1469 = vmatprep.subr.mxu0 0.0
        %1470 = vmatpush1.msra.mxu0 %v1215
        %1471 = vmatprep.subr.mxu0 0.0
        %1472 = vmatpush1.msra.mxu0 %v1214
        %1473 = vmatprep.subr.mxu0 0.0
        %1474 = vmatpush1.msra.mxu0 %v1213
        %1475 = vmatprep.subr.mxu0 0.0
        %1476 = vmatpush1.msra.mxu0 %v1212
        %1477 = vmatprep.subr.mxu0 0.0
        %1478 = vmatpush1.msra.mxu0 %v1211
        %1479 = vmatprep.subr.mxu0 0.0
        %1480 = vmatpush1.msra.mxu0 %v1210
        %1481 = vmatprep.subr.mxu0 0.0
        %1482 = vmatpush1.msra.mxu0 %v1209
        %1483 = vmatprep.subr.mxu0 0.0
        %1484 = vmatpush1.msra.mxu0 %v1208
        %1485 = vmatprep.subr.mxu0 0.0
        %1486 = vmatpush1.msra.mxu0 %v1207
        %1487 = vmatprep.subr.mxu0 0.0
        %1488 = vmatpush1.msra.mxu0 %v1206
        %1489 = vmatprep.subr.mxu0 0.0
        %1490 = vmatpush1.msra.mxu0 %v1205
        %1491 = vmatprep.subr.mxu0 0.0
        %1492 = vmatpush1.msra.mxu0 %v1204
        %1493 = vmatprep.subr.mxu0 0.0
        %1494 = vmatpush2.msra.mxu0 %v1235
        %1495 = vmatprep.subr.mxu0 0.0
        %1496 = vmatpush2.msra.mxu0 %v1234
        %1497 = vmatprep.subr.mxu0 0.0
        %1498 = vmatpush2.msra.mxu0 %v1233
        %1499 = vmatprep.subr.mxu0 0.0
        %1500 = vmatpush2.msra.mxu0 %v1232
        %1501 = vmatprep.subr.mxu0 0.0
        %1502 = vmatpush2.msra.mxu0 %v1231
        %1503 = vmatprep.subr.mxu0 0.0
        %1504 = vmatpush2.msra.mxu0 %v1230
        %1505 = vmatprep.subr.mxu0 0.0
        %1506 = vmatpush2.msra.mxu0 %v1229
        %1507 = vmatprep.subr.mxu0 0.0
        %1508 = vmatpush2.msra.mxu0 %v1228
        %1509 = vmatprep.subr.mxu0 0.0
        %1510 = vmatpush2.msra.mxu0 %v1227
        %1511 = vmatprep.subr.mxu0 0.0
        %1512 = vmatpush2.msra.mxu0 %v1226
        %1513 = vmatprep.subr.mxu0 0.0
        %1514 = vmatpush2.msra.mxu0 %v1225
        %1515 = vmatprep.subr.mxu0 0.0
        %1516 = vmatpush2.msra.mxu0 %v1224
        %1517 = vmatprep.subr.mxu0 0.0
        %1518 = vmatpush2.msra.mxu0 %v1223
        %1519 = vmatprep.subr.mxu0 0.0
        %1520 = vmatpush2.msra.mxu0 %v1222
        %1521 = vmatprep.subr.mxu0 0.0
        %1522 = vmatpush2.msra.mxu0 %v1221
        %1523 = vmatprep.subr.mxu0 0.0
        %1524 = vmatpush2.msra.mxu0 %v1220
        %1525 = vmatprep.mubr.f32.mxu0 %v1015
        %1526 = vmatmul.mubr.f32.gmra.mxu0 %v1014
        %v1527 = vpop.f32.mrf.mxu0
        %v1528 = vadd.f32 %v1303, %v1527
        %v1529 = vpop.f32.mrf.mxu0
        %1530 = vmatprep.mubr.f32.mxu0 %v1019
        %1531 = vmatmul.mubr.f32.gmra.mxu0 %v1018
        %v1532 = vpop.f32.mrf.mxu0
        %v1533 = vadd.f32 %v1308, %v1532
        %v1534 = vpop.f32.mrf.mxu0
        %1535 = vmatprep.mubr.f32.mxu0 %v1023
        %1536 = vmatmul.mubr.f32.gmra.mxu0 %v1022
        %v1537 = vpop.f32.mrf.mxu0
        %v1538 = vadd.f32 %v1313, %v1537
        %v1539 = vpop.f32.mrf.mxu0
        %1540 = vmatprep.mubr.f32.mxu0 %v1027
        %1541 = vmatmul.mubr.f32.gmra.mxu0 %v1026
        %v1542 = vpop.f32.mrf.mxu0
        %v1543 = vadd.f32 %v1318, %v1542
        %v1544 = vpop.f32.mrf.mxu0
        %1545 = vmatprep.mubr.f32.mxu0 %v1031
        %1546 = vmatmul.mubr.f32.gmra.mxu0 %v1030
        %v1547 = vpop.f32.mrf.mxu0
        %v1548 = vadd.f32 %v1323, %v1547
        %v1549 = vpop.f32.mrf.mxu0
        %1550 = vmatprep.mubr.f32.mxu0 %v1035
        %1551 = vmatmul.mubr.f32.gmra.mxu0 %v1034
        %v1552 = vpop.f32.mrf.mxu0
        %v1553 = vadd.f32 %v1328, %v1552
        %v1554 = vpop.f32.mrf.mxu0
        %1555 = vmatprep.mubr.f32.mxu0 %v1039
        %1556 = vmatmul.mubr.f32.gmra.mxu0 %v1038
        %v1557 = vpop.f32.mrf.mxu0
        %v1558 = vadd.f32 %v1333, %v1557
        %v1559 = vpop.f32.mrf.mxu0
        %1560 = vmatprep.mubr.f32.mxu0 %v1043
        %1561 = vmatmul.mubr.f32.gmra.mxu0 %v1042
        %v1562 = vpop.f32.mrf.mxu0
        %v1563 = vadd.f32 %v1338, %v1562
        %v1564 = vpop.f32.mrf.mxu0
        %1565 = vmatprep.mubr.f32.mxu0 %v1047
        %1566 = vmatmul.mubr.f32.gmra.mxu0 %v1046
        %v1567 = vpop.f32.mrf.mxu0
        %v1568 = vadd.f32 %v1343, %v1567
        %v1569 = vpop.f32.mrf.mxu0
        %1570 = vmatprep.mubr.f32.mxu0 %v1051
        %1571 = vmatmul.mubr.f32.gmra.mxu0 %v1050
        %v1572 = vpop.f32.mrf.mxu0
        %v1573 = vadd.f32 %v1348, %v1572
        %v1574 = vpop.f32.mrf.mxu0
        %1575 = vmatprep.mubr.f32.mxu0 %v1055
        %1576 = vmatmul.mubr.f32.gmra.mxu0 %v1054
        %v1577 = vpop.f32.mrf.mxu0
        %v1578 = vadd.f32 %v1353, %v1577
        %v1579 = vpop.f32.mrf.mxu0
        %1580 = vmatprep.mubr.f32.mxu0 %v1059
        %1581 = vmatmul.mubr.f32.gmra.mxu0 %v1058
        %v1582 = vpop.f32.mrf.mxu0
        %v1583 = vadd.f32 %v1358, %v1582
        %v1584 = vpop.f32.mrf.mxu0
        %1585 = vmatprep.mubr.f32.mxu0 %v1063
        %1586 = vmatmul.mubr.f32.gmra.mxu0 %v1062
        %v1587 = vpop.f32.mrf.mxu0
        %v1588 = vadd.f32 %v1363, %v1587
        %v1589 = vpop.f32.mrf.mxu0
        %1590 = vmatprep.mubr.f32.mxu0 %v1067
        %1591 = vmatmul.mubr.f32.gmra.mxu0 %v1066
        %v1592 = vpop.f32.mrf.mxu0
        %v1593 = vadd.f32 %v1368, %v1592
        %v1594 = vpop.f32.mrf.mxu0
        %1595 = vmatprep.mubr.f32.mxu0 %v1071
        %1596 = vmatmul.mubr.f32.gmra.mxu0 %v1070
        %v1597 = vpop.f32.mrf.mxu0
        %v1598 = vadd.f32 %v1373, %v1597
        %v1599 = vpop.f32.mrf.mxu0
        %1600 = vmatprep.mubr.f32.mxu0 %v1075
        %1601 = vmatmul.mubr.f32.gmra.mxu0 %v1074
        %v1602 = vpop.f32.mrf.mxu0
        %v1603 = vadd.f32 %v1378, %v1602
        %v1604 = vpop.f32.mrf.mxu0
        %1605 = vmatprep.mubr.f32.mxu0 %v1079
        %1606 = vmatmul.mubr.f32.gmra.mxu0 %v1078
        %v1607 = vpop.f32.mrf.mxu0
        %v1608 = vadd.f32 %v1383, %v1607
        %v1609 = vpop.f32.mrf.mxu0
        %1610 = vmatprep.mubr.f32.mxu0 %v1083
        %1611 = vmatmul.mubr.f32.gmra.mxu0 %v1082
        %v1612 = vpop.f32.mrf.mxu0
        %v1613 = vadd.f32 %v1388, %v1612
        %v1614 = vpop.f32.mrf.mxu0
        %1615 = vmatprep.mubr.f32.mxu0 %v1087
        %1616 = vmatmul.mubr.f32.gmra.mxu0 %v1086
        %v1617 = vpop.f32.mrf.mxu0
        %v1618 = vadd.f32 %v1393, %v1617
        %v1619 = vpop.f32.mrf.mxu0
        %1620 = vmatprep.mubr.f32.mxu0 %v1091
        %1621 = vmatmul.mubr.f32.gmra.mxu0 %v1090
        %v1622 = vpop.f32.mrf.mxu0
        %v1623 = vadd.f32 %v1398, %v1622
        %v1624 = vpop.f32.mrf.mxu0
        %1625 = vmatprep.mubr.f32.mxu0 %v1095
        %1626 = vmatmul.mubr.f32.gmra.mxu0 %v1094
        %v1627 = vpop.f32.mrf.mxu0
        %v1628 = vadd.f32 %v1403, %v1627
        %v1629 = vpop.f32.mrf.mxu0
        %1630 = vmatprep.mubr.f32.mxu0 %v1099
        %1631 = vmatmul.mubr.f32.gmra.mxu0 %v1098
        %v1632 = vpop.f32.mrf.mxu0
        %v1633 = vadd.f32 %v1408, %v1632
        %v1634 = vpop.f32.mrf.mxu0
        %1635 = vmatprep.mubr.f32.mxu0 %v1103
        %1636 = vmatmul.mubr.f32.gmra.mxu0 %v1102
        %v1637 = vpop.f32.mrf.mxu0
        %v1638 = vadd.f32 %v1413, %v1637
        %v1639 = vpop.f32.mrf.mxu0
        %1640 = vmatprep.mubr.f32.mxu0 %v1107
        %1641 = vmatmul.mubr.f32.gmra.mxu0 %v1106
        %v1642 = vpop.f32.mrf.mxu0
        %v1643 = vadd.f32 %v1418, %v1642
        %v1644 = vpop.f32.mrf.mxu0
        %1645 = vmatprep.mubr.f32.mxu0 %v1111
        %1646 = vmatmul.mubr.f32.gmra.mxu0 %v1110
        %v1647 = vpop.f32.mrf.mxu0
        %v1648 = vadd.f32 %v1423, %v1647
        %v1649 = vpop.f32.mrf.mxu0
        %1650 = vmatprep.mubr.f32.mxu0 %v1115
        %1651 = vmatmul.mubr.f32.gmra.mxu0 %v1114
        %v1652 = vpop.f32.mrf.mxu0
        %v1653 = vadd.f32 %v1428, %v1652
        %v1654 = vpop.f32.mrf.mxu0
        %1655 = vmatprep.mubr.f32.mxu0 %v1119
        %1656 = vmatmul.mubr.f32.gmra.mxu0 %v1118
        %v1657 = vpop.f32.mrf.mxu0
        %v1658 = vadd.f32 %v1433, %v1657
        %v1659 = vpop.f32.mrf.mxu0
        %1660 = vmatprep.mubr.f32.mxu0 %v1123
        %1661 = vmatmul.mubr.f32.gmra.mxu0 %v1122
        %v1662 = vpop.f32.mrf.mxu0
        %v1663 = vadd.f32 %v1438, %v1662
        %v1664 = vpop.f32.mrf.mxu0
        %1665 = vmatprep.mubr.f32.mxu0 %v1127
        %1666 = vmatmul.mubr.f32.gmra.mxu0 %v1126
        %v1667 = vpop.f32.mrf.mxu0
        %v1668 = vadd.f32 %v1443, %v1667
        %v1669 = vpop.f32.mrf.mxu0
        %1670 = vmatprep.mubr.f32.mxu0 %v1131
        %1671 = vmatmul.mubr.f32.gmra.mxu0 %v1130
        %v1672 = vpop.f32.mrf.mxu0
        %v1673 = vadd.f32 %v1448, %v1672
        %v1674 = vpop.f32.mrf.mxu0
        %1675 = vmatprep.mubr.f32.mxu0 %v1135
        %1676 = vmatmul.mubr.f32.gmra.mxu0 %v1134
        %v1677 = vpop.f32.mrf.mxu0
        %v1678 = vadd.f32 %v1453, %v1677
        %v1679 = vpop.f32.mrf.mxu0
        %1680 = vmatprep.mubr.f32.mxu0 %v1139
        %1681 = vmatmul.mubr.f32.gmra.mxu0 %v1138
        %v1682 = vpop.f32.mrf.mxu0
        %v1683 = vadd.f32 %v1458, %v1682
        %v1684 = vpop.f32.mrf.mxu0
        %1685 = vdwg.mxu0
        %v1686 = vadd.f32 %v1140, %v1528
        %v1687 = vadd.f32 %v1141, %v1533
        %v1688 = vadd.f32 %v1142, %v1538
        %v1689 = vadd.f32 %v1143, %v1543
        %v1690 = vadd.f32 %v1144, %v1548
        %v1691 = vadd.f32 %v1145, %v1553
        %v1692 = vadd.f32 %v1146, %v1558
        %v1693 = vadd.f32 %v1147, %v1563
        %v1694 = vadd.f32 %v1148, %v1568
        %v1695 = vadd.f32 %v1149, %v1573
        %v1696 = vadd.f32 %v1150, %v1578
        %v1697 = vadd.f32 %v1151, %v1583
        %v1698 = vadd.f32 %v1152, %v1588
        %v1699 = vadd.f32 %v1153, %v1593
        %v1700 = vadd.f32 %v1154, %v1598
        %v1701 = vadd.f32 %v1155, %v1603
        %v1702 = vadd.f32 %v1156, %v1608
        %v1703 = vadd.f32 %v1157, %v1613
        %v1704 = vadd.f32 %v1158, %v1618
        %v1705 = vadd.f32 %v1159, %v1623
        %v1706 = vadd.f32 %v1160, %v1628
        %v1707 = vadd.f32 %v1161, %v1633
        %v1708 = vadd.f32 %v1162, %v1638
        %v1709 = vadd.f32 %v1163, %v1643
        %v1710 = vadd.f32 %v1164, %v1648
        %v1711 = vadd.f32 %v1165, %v1653
        %v1712 = vadd.f32 %v1166, %v1658
        %v1713 = vadd.f32 %v1167, %v1663
        %v1714 = vadd.f32 %v1168, %v1668
        %v1715 = vadd.f32 %v1169, %v1673
        %v1716 = vadd.f32 %v1170, %v1678
        %v1717 = vadd.f32 %v1171, %v1683
        %1718 = vst [vmem:[#allocation2] sm:$0xff] %v1686
        %1719 = vst [vmem:[#allocation2 + $0x8] sm:$0xff] %v1687
        %1720 = vst [vmem:[#allocation2 + $0x10] sm:$0xff] %v1688
        %1721 = vst [vmem:[#allocation2 + $0x18] sm:$0xff] %v1689
        %1722 = vst [vmem:[#allocation2 + $0x20] sm:$0xff] %v1690
        %1723 = vst [vmem:[#allocation2 + $0x28] sm:$0xff] %v1691
        %1724 = vst [vmem:[#allocation2 + $0x30] sm:$0xff] %v1692
        %1725 = vst [vmem:[#allocation2 + $0x38] sm:$0xff] %v1693
        %1726 = vst [vmem:[#allocation2 + $0x40] sm:$0xff] %v1694
        %1727 = vst [vmem:[#allocation2 + $0x48] sm:$0xff] %v1695
        %1728 = vst [vmem:[#allocation2 + $0x50] sm:$0xff] %v1696
        %1729 = vst [vmem:[#allocation2 + $0x58] sm:$0xff] %v1697
        %1730 = vst [vmem:[#allocation2 + $0x60] sm:$0xff] %v1698
        %1731 = vst [vmem:[#allocation2 + $0x68] sm:$0xff] %v1699
        %1732 = vst [vmem:[#allocation2 + $0x70] sm:$0xff] %v1700
        %1733 = vst [vmem:[#allocation2 + $0x78] sm:$0xff] %v1701
        %1734 = vst [vmem:[#allocation2 + $0x80] sm:$0xff] %v1702
        %1735 = vst [vmem:[#allocation2 + $0x88] sm:$0xff] %v1703
        %1736 = vst [vmem:[#allocation2 + $0x90] sm:$0xff] %v1704
        %1737 = vst [vmem:[#allocation2 + $0x98] sm:$0xff] %v1705
        %1738 = vst [vmem:[#allocation2 + $0xa0] sm:$0xff] %v1706
        %1739 = vst [vmem:[#allocation2 + $0xa8] sm:$0xff] %v1707
        %1740 = vst [vmem:[#allocation2 + $0xb0] sm:$0xff] %v1708
        %1741 = vst [vmem:[#allocation2 + $0xb8] sm:$0xff] %v1709
        %1742 = vst [vmem:[#allocation2 + $0xc0] sm:$0xff] %v1710
        %1743 = vst [vmem:[#allocation2 + $0xc8] sm:$0xff] %v1711
        %1744 = vst [vmem:[#allocation2 + $0xd0] sm:$0xff] %v1712
        %1745 = vst [vmem:[#allocation2 + $0xd8] sm:$0xff] %v1713
        %1746 = vst [vmem:[#allocation2 + $0xe0] sm:$0xff] %v1714
        %1747 = vst [vmem:[#allocation2 + $0xe8] sm:$0xff] %v1715
        %1748 = vst [vmem:[#allocation2 + $0xf0] sm:$0xff] %v1716
        %1749 = vst [vmem:[#allocation2 + $0xf8] sm:$0xff] %v1717
        %p1750 = scmp.eq.s32.totalorder %s30, 1
        // Predicated region
        $region57: #{feed_forward.1} parent=39 // pred_check
          %p1751 = pneg %p1750
        $region58: #{feed_forward.1} parent=39 // pred_check_branch
          %1753 = sbr.rel (%p1751) target = $region60
        $region59: #{feed_forward.1} parent=39 // pred_region
          %v1754 = vld [vmem:[#allocation2] sm:$0xff]
          %v1755 = vld [vmem:[#allocation2 + $0x8] sm:$0xff]
          %v1756 = vld [vmem:[#allocation2 + $0x10] sm:$0xff]
          %v1757 = vld [vmem:[#allocation2 + $0x18] sm:$0xff]
          %v1758 = vld [vmem:[#allocation2 + $0x20] sm:$0xff]
          %v1759 = vld [vmem:[#allocation2 + $0x28] sm:$0xff]
          %v1760 = vld [vmem:[#allocation2 + $0x30] sm:$0xff]
          %v1761 = vld [vmem:[#allocation2 + $0x38] sm:$0xff]
          %v1762 = vld [vmem:[#allocation2 + $0x40] sm:$0xff]
          %v1763 = vld [vmem:[#allocation2 + $0x48] sm:$0xff]
          %v1764 = vld [vmem:[#allocation2 + $0x50] sm:$0xff]
          %v1765 = vld [vmem:[#allocation2 + $0x58] sm:$0xff]
          %v1766 = vld [vmem:[#allocation2 + $0x60] sm:$0xff]
          %v1767 = vld [vmem:[#allocation2 + $0x68] sm:$0xff]
          %v1768 = vld [vmem:[#allocation2 + $0x70] sm:$0xff]
          %v1769 = vld [vmem:[#allocation2 + $0x78] sm:$0xff]
          %v1770 = vld [vmem:[#allocation2 + $0x80] sm:$0xff]
          %v1771 = vld [vmem:[#allocation2 + $0x88] sm:$0xff]
          %v1772 = vld [vmem:[#allocation2 + $0x90] sm:$0xff]
          %v1773 = vld [vmem:[#allocation2 + $0x98] sm:$0xff]
          %v1774 = vld [vmem:[#allocation2 + $0xa0] sm:$0xff]
          %v1775 = vld [vmem:[#allocation2 + $0xa8] sm:$0xff]
          %v1776 = vld [vmem:[#allocation2 + $0xb0] sm:$0xff]
          %v1777 = vld [vmem:[#allocation2 + $0xb8] sm:$0xff]
          %v1778 = vld [vmem:[#allocation2 + $0xc0] sm:$0xff]
          %v1779 = vld [vmem:[#allocation2 + $0xc8] sm:$0xff]
          %v1780 = vld [vmem:[#allocation2 + $0xd0] sm:$0xff]
          %v1781 = vld [vmem:[#allocation2 + $0xd8] sm:$0xff]
          %v1782 = vld [vmem:[#allocation2 + $0xe0] sm:$0xff]
          %v1783 = vld [vmem:[#allocation2 + $0xe8] sm:$0xff]
          %v1784 = vld [vmem:[#allocation2 + $0xf0] sm:$0xff]
          %v1785 = vld [vmem:[#allocation2 + $0xf8] sm:$0xff]
          %v1786 = vld [vmem:[%s4] sm:$0x1]
          %v1788 = vlaneseq
          %v1789 = vshrl.u32 %v1788, 7
          %v1790 = vsub.s32 0, %v1789
          %v1791 = vrot.slane %v1786, %v1790
          %v1793 = vadd.f32 %v1754, %v1791
          %v1794 = vadd.f32 %v1755, %v1791
          %v1795 = vadd.f32 %v1756, %v1791
          %v1796 = vadd.f32 %v1757, %v1791
          %v1797 = vadd.f32 %v1758, %v1791
          %v1798 = vadd.f32 %v1759, %v1791
          %v1799 = vadd.f32 %v1760, %v1791
          %v1800 = vadd.f32 %v1761, %v1791
          %v1801 = vadd.f32 %v1762, %v1791
          %v1802 = vadd.f32 %v1763, %v1791
          %v1803 = vadd.f32 %v1764, %v1791
          %v1804 = vadd.f32 %v1765, %v1791
          %v1805 = vadd.f32 %v1766, %v1791
          %v1806 = vadd.f32 %v1767, %v1791
          %v1807 = vadd.f32 %v1768, %v1791
          %v1808 = vadd.f32 %v1769, %v1791
          %v1809 = vadd.f32 %v1770, %v1791
          %v1810 = vadd.f32 %v1771, %v1791
          %v1811 = vadd.f32 %v1772, %v1791
          %v1812 = vadd.f32 %v1773, %v1791
          %v1813 = vadd.f32 %v1774, %v1791
          %v1814 = vadd.f32 %v1775, %v1791
          %v1815 = vadd.f32 %v1776, %v1791
          %v1816 = vadd.f32 %v1777, %v1791
          %v1817 = vadd.f32 %v1778, %v1791
          %v1818 = vadd.f32 %v1779, %v1791
          %v1819 = vadd.f32 %v1780, %v1791
          %v1820 = vadd.f32 %v1781, %v1791
          %v1821 = vadd.f32 %v1782, %v1791
          %v1822 = vadd.f32 %v1783, %v1791
          %v1823 = vadd.f32 %v1784, %v1791
          %v1824 = vadd.f32 %v1785, %v1791
          %1825 = vst [vmem:[%s331] sm:$0xff] %v1793
          %1826 = vst [vmem:[%s331 + $0x8] sm:$0xff] %v1794
          %1827 = vst [vmem:[%s331 + $0x10] sm:$0xff] %v1795
          %1828 = vst [vmem:[%s331 + $0x18] sm:$0xff] %v1796
          %1829 = vst [vmem:[%s331 + $0x20] sm:$0xff] %v1797
          %1830 = vst [vmem:[%s331 + $0x28] sm:$0xff] %v1798
          %1831 = vst [vmem:[%s331 + $0x30] sm:$0xff] %v1799
          %1832 = vst [vmem:[%s331 + $0x38] sm:$0xff] %v1800
          %1833 = vst [vmem:[%s331 + $0x40] sm:$0xff] %v1801
          %1834 = vst [vmem:[%s331 + $0x48] sm:$0xff] %v1802
          %1835 = vst [vmem:[%s331 + $0x50] sm:$0xff] %v1803
          %1836 = vst [vmem:[%s331 + $0x58] sm:$0xff] %v1804
          %1837 = vst [vmem:[%s331 + $0x60] sm:$0xff] %v1805
          %1838 = vst [vmem:[%s331 + $0x68] sm:$0xff] %v1806
          %1839 = vst [vmem:[%s331 + $0x70] sm:$0xff] %v1807
          %1840 = vst [vmem:[%s331 + $0x78] sm:$0xff] %v1808
          %1841 = vst [vmem:[%s331 + $0x80] sm:$0xff] %v1809
          %1842 = vst [vmem:[%s331 + $0x88] sm:$0xff] %v1810
          %1843 = vst [vmem:[%s331 + $0x90] sm:$0xff] %v1811
          %1844 = vst [vmem:[%s331 + $0x98] sm:$0xff] %v1812
          %1845 = vst [vmem:[%s331 + $0xa0] sm:$0xff] %v1813
          %1846 = vst [vmem:[%s331 + $0xa8] sm:$0xff] %v1814
          %1847 = vst [vmem:[%s331 + $0xb0] sm:$0xff] %v1815
          %1848 = vst [vmem:[%s331 + $0xb8] sm:$0xff] %v1816
          %1849 = vst [vmem:[%s331 + $0xc0] sm:$0xff] %v1817
          %1850 = vst [vmem:[%s331 + $0xc8] sm:$0xff] %v1818
          %1851 = vst [vmem:[%s331 + $0xd0] sm:$0xff] %v1819
          %1852 = vst [vmem:[%s331 + $0xd8] sm:$0xff] %v1820
          %1853 = vst [vmem:[%s331 + $0xe0] sm:$0xff] %v1821
          %1854 = vst [vmem:[%s331 + $0xe8] sm:$0xff] %v1822
          %1855 = vst [vmem:[%s331 + $0xf0] sm:$0xff] %v1823
          %1856 = vst [vmem:[%s331 + $0xf8] sm:$0xff] %v1824
        $region60: #{feed_forward.1} parent=39 // pred_fallthru
          _
        %s1857 = sand.u32 %s165, 1
        %s1858 = scalar_lea.sflag [#allocation5], %s1857
        %s1859 = sand.u32 %s165, 1
        %s1860 = smul.addr %s1859, 256
        %s1861 = scalar_lea.vmem [#allocation9], %s1860
        // Predicated region
        $region61: #{feed_forward.1} parent=39 // pred_check
          %p1862 = pneg %p175
        $region62: #{feed_forward.1} parent=39 // pred_check_branch
          %1864 = sbr.rel (%p1862) target = $region64
        $region63: #{feed_forward.1} parent=39 // pred_region
          %s1865 = smul.u32 32, %s29
          %s1867 = ssub.s32 4096, 4096
          %1868 = vsyncadd %s1858, %s1867
          %s1869 = smul.addr %s1865, 128
          %s1870 = scalar_lea.hbm %s5, %s1869
          %s1871 = sshll.u32 %s1861, 4
          %s1872 = int_to_ptr.vmem [resolvable:$true] %s1871
          %1877 = dma.vmem_to_hbm [thread:$0]  %s1872, 4096, %s1870, %s1858, 128, 128, 8
        $region64: #{feed_forward.1} parent=39 // pred_fallthru
          _
      $region40: #{feed_forward.1} parent=5 // pred_fallthru
        _
      %p1878 = scmp.le.s32.totalorder 2, %s20
      // Predicated region
      $region65: #{feed_forward.1} parent=5 // pred_check
        %p1879 = pneg %p1878
      $region66: #{feed_forward.1} parent=5 // pred_check_branch
        %1881 = sbr.rel (%p1879) target = $region68
      $region67: #{feed_forward.1} parent=5 // pred_region
        %s1882 = ssub.s32 %s20, 2
        // Predicated region
        $region69: #{feed_forward.1} parent=67 // pred_check
          %p1883 = pneg %p181
        $region70: #{feed_forward.1} parent=67 // pred_check_branch
          %1885 = sbr.rel (%p1883) target = $region72
        $region71: #{feed_forward.1} parent=67 // pred_region
          %s1886 = sand.u32 %s166, 1
          %s1887 = scalar_lea.sflag [#allocation5], %s1886
          %s1888 = sand.u32 %s166, 1
          %s1889 = smul.addr %s1888, 256
          %s1890 = scalar_lea.vmem [#allocation9], %s1889
          %1891 = dma.done %s1887, 4096
        $region72: #{feed_forward.1} parent=67 // pred_fallthru
          _
      $region68: #{feed_forward.1} parent=5 // pred_fallthru
        _
    $region6: #{feed_forward.1} parent=1 // loop_footer
      %s24 = sadd.s32 1, %s20
    $region7: #{feed_forward.1} parent=1 // loop_footer_branch
      %19 = sbr.rel target = $region3
    $region8: #{feed_forward.1} parent=1 // loop_exit
      _
    %1892 = vsyncpa [#allocation4], 1
    %s1893 = scalar_lea.sflag [#allocation4], 1
    %1894 = vsyncpa %s1893, 1
    %1895 = vsyncpa [#allocation7], 1
    %s1896 = scalar_lea.sflag [#allocation7], 1
    %1897 = vsyncpa %s1896, 1
    %1898 = vsyncpa [#allocation5], 1
    %s1899 = scalar_lea.sflag [#allocation5], 1
    %1900 = vsyncpa %s1899, 1

</llo_original>
